<compile_context>
chip_gen: v5e
topology: v5e:2x2
jax: 0.10.0
libtpu: 0.0.40
codegen_flags: <defaults>
</compile_context>

<pallas_src>
import jax
import jax.numpy as jnp
from jax.experimental import pallas as pl
from jax.experimental.pallas import tpu as pltpu


def _fused_cat_conv1x1_kernel(x1_ref, x2_ref, x3_ref, x4_ref, w_ref,
                              o_ref, xcat_ref):
    """out = W @ concat(x1, x2, x3, x4) with a single K=Cin MXU dot.

    The concat is materialized once in a VMEM scratch; all concat offsets
    (0, 64, 192, 224) are multiples of 8, so these are cheap sublane-aligned
    VMEM copies (far cheaper than the f32 accumulator round-trips they replace).
    """
    off = 0
    for ref in (x1_ref, x2_ref, x3_ref, x4_ref):
        c = ref.shape[0]
        xcat_ref[off:off + c, :] = ref[...]
        off += c
    # Single K=256 dot, f32 accumulation on the MXU; result goes straight to
    # the output store (no intermediate VMEM accumulator).
    o_ref[...] = jnp.dot(w_ref[...], xcat_ref[...],
                         preferred_element_type=jnp.float32).astype(o_ref.dtype)


def fused_cat_conv1x1(x_mats, w, out_dtype):
    """x_mats: 4 arrays (C_i, HW); w: (Cout, Cin) -> out (Cout, HW).

    Grid-free pallas_call: whole arrays resident in VMEM, one invocation.
    """
    Cout, Cin = w.shape
    HW = x_mats[0].shape[1]
    assert sum(x.shape[0] for x in x_mats) == Cin

    x_bytes = sum(x.size * x.dtype.itemsize for x in x_mats)
    w_bytes = w.size * w.dtype.itemsize
    o_bytes = Cout * HW * jnp.dtype(out_dtype).itemsize
    cost = pl.CostEstimate(
        flops=2 * Cout * Cin * HW,
        transcendentals=0,
        bytes_accessed=x_bytes + w_bytes + o_bytes,
    )

    return pl.pallas_call(
        _fused_cat_conv1x1_kernel,
        out_shape=jax.ShapeDtypeStruct((Cout, HW), out_dtype),
        scratch_shapes=[pltpu.VMEM((Cin, HW), jnp.float32)],
        cost_estimate=cost,
    )(*x_mats, w)


@jax.jit
def module_m_forward(x27, x33, x39, x43, conv_weight):
    """conv_weight: (Cout, Cin, 1, 1) float32 (PyTorch OIHW layout)."""
    xs = (x27, x33, x39, x43)
    N, _, H, W = x27.shape
    # The module is specified for batch size 1; that is what makes the
    # NCHW -> (C_i, H*W) view a free (contiguous) reshape with no transpose.
    assert N == 1, "fused NCHW path assumes batch size 1"
    HW = H * W
    Cout, Cin = conv_weight.shape[0], conv_weight.shape[1]

    # Free reshapes: (1, C_i, H, W) -> (C_i, H*W).
    x_mats = [x.reshape(x.shape[1], HW) for x in xs]
    # Free reshape: (Cout, Cin, 1, 1) -> (Cout, Cin); passed whole to the
    # kernel (no wrapper-side per-group weight slices / extra DMAs).
    w = conv_weight.reshape(Cout, Cin)

    out = fused_cat_conv1x1(x_mats, w, x27.dtype)  # (Cout, H*W)
    return out.reshape(1, Cout, H, W)              # NCHW, free reshape


if __name__ == "__main__":
    key = jax.random.PRNGKey(0)
    k1, k2, k3, k4, kw = jax.random.split(key, 5)

    # Shapes implied by the module's forward.
    x27 = jax.random.normal(k1, (1, 64, 28, 28), dtype=jnp.float32)
    x33 = jax.random.normal(k2, (1, 128, 28, 28), dtype=jnp.float32)
    x39 = jax.random.normal(k3, (1, 32, 28, 28), dtype=jnp.float32)
    x43 = jax.random.normal(k4, (1, 32, 28, 28), dtype=jnp.float32)

    # Deterministic Conv2d(256, 128, 1x1, bias=False) weight, PyTorch layout.
    fan_in = 256
    bound = 1.0 / (fan_in ** 0.5)
    conv_weight = jax.random.uniform(
        kw, (128, 256, 1, 1), dtype=jnp.float32, minval=-bound, maxval=bound
    )

    out = module_m_forward(x27, x33, x39, x43, conv_weight)
    jax.block_until_ready(out)

    # Sanity check against plain-JAX reference (concat + lax conv, full f32).
    x44 = jnp.concatenate([x27, x33, x39, x43], axis=1)
    ref = jax.lax.conv_general_dilated(
        x44, conv_weight, window_strides=(1, 1), padding="VALID",
        dimension_numbers=("NCHW", "OIHW", "NCHW"),
        precision=jax.lax.Precision.HIGHEST,
    )
    assert out.shape == (1, 128, 28, 28), out.shape
    assert jnp.allclose(out, ref, atol=1e-4, rtol=1e-4)

    print("KERNEL_OK")
</pallas_src>

<mosaic_0001>
module attributes {stable_mosaic.version = 11 : i64} {
  func.func @_fused_cat_conv1x1_kernel(%arg0: memref<64x784xf32, #tpu.memory_space<vmem>>, %arg1: memref<128x784xf32, #tpu.memory_space<vmem>>, %arg2: memref<32x784xf32, #tpu.memory_space<vmem>>, %arg3: memref<32x784xf32, #tpu.memory_space<vmem>>, %arg4: memref<128x256xf32, #tpu.memory_space<vmem>>, %arg5: memref<128x784xf32, #tpu.memory_space<vmem>>, %arg6: memref<256x784xf32, #tpu.memory_space<vmem>>) attributes {dimension_semantics = [], scalar_prefetch = 0 : i64, scratch_operands = 1 : i64, tpu.core_type = #tpu.core_type<tc>} {
    %c0 = arith.constant 0 : index
    %c0_0 = arith.constant 0 : index
    %0 = vector.load %arg0[%c0, %c0_0] : memref<64x784xf32, #tpu.memory_space<vmem>>, vector<64x784xf32>
    %c0_1 = arith.constant 0 : index
    %c0_2 = arith.constant 0 : index
    %1 = vector.load %arg6[%c0_1, %c0_2] : memref<256x784xf32, #tpu.memory_space<vmem>>, vector<64x784xf32>
    tpu.vector_store %arg6[%c0_1, %c0_2], %0 {strides = array<i32>} : memref<256x784xf32, #tpu.memory_space<vmem>>, vector<64x784xf32>,
    %c0_3 = arith.constant 0 : index
    %c0_4 = arith.constant 0 : index
    %2 = vector.load %arg1[%c0_3, %c0_4] : memref<128x784xf32, #tpu.memory_space<vmem>>, vector<128x784xf32>
    %c64 = arith.constant 64 : index
    %c0_5 = arith.constant 0 : index
    %3 = vector.load %arg6[%c64, %c0_5] : memref<256x784xf32, #tpu.memory_space<vmem>>, vector<128x784xf32>
    tpu.vector_store %arg6[%c64, %c0_5], %2 {strides = array<i32>} : memref<256x784xf32, #tpu.memory_space<vmem>>, vector<128x784xf32>,
    %c0_6 = arith.constant 0 : index
    %c0_7 = arith.constant 0 : index
    %4 = vector.load %arg2[%c0_6, %c0_7] : memref<32x784xf32, #tpu.memory_space<vmem>>, vector<32x784xf32>
    %c192 = arith.constant 192 : index
    %c0_8 = arith.constant 0 : index
    %5 = vector.load %arg6[%c192, %c0_8] : memref<256x784xf32, #tpu.memory_space<vmem>>, vector<32x784xf32>
    tpu.vector_store %arg6[%c192, %c0_8], %4 {strides = array<i32>} : memref<256x784xf32, #tpu.memory_space<vmem>>, vector<32x784xf32>,
    %c0_9 = arith.constant 0 : index
    %c0_10 = arith.constant 0 : index
    %6 = vector.load %arg3[%c0_9, %c0_10] : memref<32x784xf32, #tpu.memory_space<vmem>>, vector<32x784xf32>
    %c224 = arith.constant 224 : index
    %c0_11 = arith.constant 0 : index
    %7 = vector.load %arg6[%c224, %c0_11] : memref<256x784xf32, #tpu.memory_space<vmem>>, vector<32x784xf32>
    tpu.vector_store %arg6[%c224, %c0_11], %6 {strides = array<i32>} : memref<256x784xf32, #tpu.memory_space<vmem>>, vector<32x784xf32>,
    %c0_12 = arith.constant 0 : index
    %c0_13 = arith.constant 0 : index
    %8 = vector.load %arg4[%c0_12, %c0_13] : memref<128x256xf32, #tpu.memory_space<vmem>>, vector<128x256xf32>
    %c0_14 = arith.constant 0 : index
    %c0_15 = arith.constant 0 : index
    %9 = vector.load %arg6[%c0_14, %c0_15] : memref<256x784xf32, #tpu.memory_space<vmem>>, vector<256x784xf32>
    %cst = arith.constant dense<0.000000e+00> : vector<128x784xf32>
    %10 = tpu.matmul %8, %9, %cst {dimension_numbers = #tpu.dot_dimension_numbers<[1], [0], [0], [1], [0, 0, 1, 1], [], []>} : vector<128x256xf32>, vector<256x784xf32>, vector<128x784xf32> -> vector<128x784xf32>
    %c0_16 = arith.constant 0 : index
    %c0_17 = arith.constant 0 : index
    %11 = vector.load %arg5[%c0_16, %c0_17] : memref<128x784xf32, #tpu.memory_space<vmem>>, vector<128x784xf32>
    tpu.vector_store %arg5[%c0_16, %c0_17], %10 {strides = array<i32>} : memref<128x784xf32, #tpu.memory_space<vmem>>, vector<128x784xf32>,
    return
  }
}

</mosaic_0001>

<llo_original>
// kernel: module_m_forward.1
$region0: #{module_m_forward.1}
  #allocation0 [shape = 'u32[]', space=smem, size = 0x4, offset = 0x4, fixed_abs, tag = 'smem constant byte address 0x4 - core index']
  #allocation1 [shape = 'u32[72,128]{1,0:T(1,128)}', space=vmem, size = 0x9000, scoped, tag = 'internal scratch']
  #allocation2 [shape = 'f32[256,784]{1,0:T(8,128)}', space=vmem, size = 0xe0000, scoped, tag = 'scratch operand']
  %s0 = inlined_call_operand.vmem [shape: f32[64,784], index: 0, kind: input, shape index: {}]
  %s1 = inlined_call_operand.vmem [shape: f32[128,784], index: 1, kind: input, shape index: {}]
  %s2 = inlined_call_operand.vmem [shape: f32[32,784], index: 2, kind: input, shape index: {}]
  %s3 = inlined_call_operand.vmem [shape: f32[32,784], index: 3, kind: input, shape index: {}]
  %s4 = inlined_call_operand.vmem [shape: f32[128,256], index: 4, kind: input, shape index: {}]
  %s5 = inlined_call_operand.vmem [shape: f32[128,784], index: 5, kind: output, shape index: {}]
  %s6 = sld [smem:[#allocation0]]
  $region30: #{module_m_forward.1} parent=0
    _
  %s8 = ssub.s32 1, %s6
  %s9 = scalar_select 0, %s8, %s6
  // Predicated region
  $region2: #{module_m_forward.1} parent=0 // pred_check
    _
  $region3: #{module_m_forward.1} parent=0 // pred_check_branch
    %11 = sbr.rel (0) target = $region5
  $region4: #{module_m_forward.1} parent=0 // pred_region
    _
  $region5: #{module_m_forward.1} parent=0 // pred_fallthru
    _
  // Predicated region
  $region6: #{module_m_forward.1} parent=0 // pred_check
    _
  $region7: #{module_m_forward.1} parent=0 // pred_check_branch
    %13 = sbr.rel (0) target = $region9
  $region8: #{module_m_forward.1} parent=0 // pred_region
    _
  $region9: #{module_m_forward.1} parent=0 // pred_fallthru
    _
  // Predicated region
  $region10: #{module_m_forward.1} parent=0 // pred_check
    _
  $region11: #{module_m_forward.1} parent=0 // pred_check_branch
    %15 = sbr.rel (0) target = $region13
  $region12: #{module_m_forward.1} parent=0 // pred_region
    _
  $region13: #{module_m_forward.1} parent=0 // pred_fallthru
    _
  // Predicated region
  $region14: #{module_m_forward.1} parent=0 // pred_check
    _
  $region15: #{module_m_forward.1} parent=0 // pred_check_branch
    %17 = sbr.rel (0) target = $region17
  $region16: #{module_m_forward.1} parent=0 // pred_region
    _
  $region17: #{module_m_forward.1} parent=0 // pred_fallthru
    _
  // Predicated region
  $region18: #{module_m_forward.1} parent=0 // pred_check
    _
  $region19: #{module_m_forward.1} parent=0 // pred_check_branch
    %19 = sbr.rel (0) target = $region21
  $region20: #{module_m_forward.1} parent=0 // pred_region
    _
  $region21: #{module_m_forward.1} parent=0 // pred_fallthru
    _
  %v20 = vld [vmem:[%s0] sm:$0xff]
  %v21 = vld [vmem:[%s0 + $0x8] sm:$0xff]
  %v22 = vld [vmem:[%s0 + $0x10] sm:$0xff]
  %v23 = vld [vmem:[%s0 + $0x18] sm:$0xff]
  %v24 = vld [vmem:[%s0 + $0x20] sm:$0xff]
  %v25 = vld [vmem:[%s0 + $0x28] sm:$0xff]
  %v26 = vld [vmem:[%s0 + $0x30] sm:$0xff]
  %v27 = vld [vmem:[%s0 + $0x38] sm:$0xff]
  %v28 = vld [vmem:[%s0 + $0x40] sm:$0xff]
  %v29 = vld [vmem:[%s0 + $0x48] sm:$0xff]
  %v30 = vld [vmem:[%s0 + $0x50] sm:$0xff]
  %v31 = vld [vmem:[%s0 + $0x58] sm:$0xff]
  %v32 = vld [vmem:[%s0 + $0x60] sm:$0xff]
  %v33 = vld [vmem:[%s0 + $0x68] sm:$0xff]
  %v34 = vld [vmem:[%s0 + $0x70] sm:$0xff]
  %v35 = vld [vmem:[%s0 + $0x78] sm:$0xff]
  %v36 = vld [vmem:[%s0 + $0x80] sm:$0xff]
  %v37 = vld [vmem:[%s0 + $0x88] sm:$0xff]
  %v38 = vld [vmem:[%s0 + $0x90] sm:$0xff]
  %v39 = vld [vmem:[%s0 + $0x98] sm:$0xff]
  %v40 = vld [vmem:[%s0 + $0xa0] sm:$0xff]
  %v41 = vld [vmem:[%s0 + $0xa8] sm:$0xff]
  %v42 = vld [vmem:[%s0 + $0xb0] sm:$0xff]
  %v43 = vld [vmem:[%s0 + $0xb8] sm:$0xff]
  %v44 = vld [vmem:[%s0 + $0xc0] sm:$0xff]
  %v45 = vld [vmem:[%s0 + $0xc8] sm:$0xff]
  %v46 = vld [vmem:[%s0 + $0xd0] sm:$0xff]
  %v47 = vld [vmem:[%s0 + $0xd8] sm:$0xff]
  %v48 = vld [vmem:[%s0 + $0xe0] sm:$0xff]
  %v49 = vld [vmem:[%s0 + $0xe8] sm:$0xff]
  %v50 = vld [vmem:[%s0 + $0xf0] sm:$0xff]
  %v51 = vld [vmem:[%s0 + $0xf8] sm:$0xff]
  %v52 = vld [vmem:[%s0 + $0x100] sm:$0xff]
  %v53 = vld [vmem:[%s0 + $0x108] sm:$0xff]
  %v54 = vld [vmem:[%s0 + $0x110] sm:$0xff]
  %v55 = vld [vmem:[%s0 + $0x118] sm:$0xff]
  %v56 = vld [vmem:[%s0 + $0x120] sm:$0xff]
  %v57 = vld [vmem:[%s0 + $0x128] sm:$0xff]
  %v58 = vld [vmem:[%s0 + $0x130] sm:$0xff]
  %v59 = vld [vmem:[%s0 + $0x138] sm:$0xff]
  %v60 = vld [vmem:[%s0 + $0x140] sm:$0xff]
  %v61 = vld [vmem:[%s0 + $0x148] sm:$0xff]
  %v62 = vld [vmem:[%s0 + $0x150] sm:$0xff]
  %v63 = vld [vmem:[%s0 + $0x158] sm:$0xff]
  %v64 = vld [vmem:[%s0 + $0x160] sm:$0xff]
  %v65 = vld [vmem:[%s0 + $0x168] sm:$0xff]
  %v66 = vld [vmem:[%s0 + $0x170] sm:$0xff]
  %v67 = vld [vmem:[%s0 + $0x178] sm:$0xff]
  %v68 = vld [vmem:[%s0 + $0x180] sm:$0xff]
  %v69 = vld [vmem:[%s0 + $0x188] sm:$0xff]
  %v70 = vld [vmem:[%s0 + $0x190] sm:$0xff]
  %v71 = vld [vmem:[%s0 + $0x198] sm:$0xff]
  %v72 = vld [vmem:[%s0 + $0x1a0] sm:$0xff]
  %v73 = vld [vmem:[%s0 + $0x1a8] sm:$0xff]
  %v74 = vld [vmem:[%s0 + $0x1b0] sm:$0xff]
  %v75 = vld [vmem:[%s0 + $0x1b8] sm:$0xff]
  %76 = vst [vmem:[#allocation2] sm:$0xff] %v20
  %77 = vst [vmem:[#allocation2 + $0x8] sm:$0xff] %v21
  %78 = vst [vmem:[#allocation2 + $0x10] sm:$0xff] %v22
  %79 = vst [vmem:[#allocation2 + $0x18] sm:$0xff] %v23
  %80 = vst [vmem:[#allocation2 + $0x20] sm:$0xff] %v24
  %81 = vst [vmem:[#allocation2 + $0x28] sm:$0xff] %v25
  %vm82 = vcmask 130048
  %83 = vst.msk [vmem:[#allocation2 + $0x30] sm:$0xff] %vm82, %v26
  %84 = vst [vmem:[#allocation2 + $0x38] sm:$0xff] %v27
  %85 = vst [vmem:[#allocation2 + $0x40] sm:$0xff] %v28
  %86 = vst [vmem:[#allocation2 + $0x48] sm:$0xff] %v29
  %87 = vst [vmem:[#allocation2 + $0x50] sm:$0xff] %v30
  %88 = vst [vmem:[#allocation2 + $0x58] sm:$0xff] %v31
  %89 = vst [vmem:[#allocation2 + $0x60] sm:$0xff] %v32
  %90 = vst.msk [vmem:[#allocation2 + $0x68] sm:$0xff] %vm82, %v33
  %91 = vst [vmem:[#allocation2 + $0x70] sm:$0xff] %v34
  %92 = vst [vmem:[#allocation2 + $0x78] sm:$0xff] %v35
  %93 = vst [vmem:[#allocation2 + $0x80] sm:$0xff] %v36
  %94 = vst [vmem:[#allocation2 + $0x88] sm:$0xff] %v37
  %95 = vst [vmem:[#allocation2 + $0x90] sm:$0xff] %v38
  %96 = vst [vmem:[#allocation2 + $0x98] sm:$0xff] %v39
  %97 = vst.msk [vmem:[#allocation2 + $0xa0] sm:$0xff] %vm82, %v40
  %98 = vst [vmem:[#allocation2 + $0xa8] sm:$0xff] %v41
  %99 = vst [vmem:[#allocation2 + $0xb0] sm:$0xff] %v42
  %100 = vst [vmem:[#allocation2 + $0xb8] sm:$0xff] %v43
  %101 = vst [vmem:[#allocation2 + $0xc0] sm:$0xff] %v44
  %102 = vst [vmem:[#allocation2 + $0xc8] sm:$0xff] %v45
  %103 = vst [vmem:[#allocation2 + $0xd0] sm:$0xff] %v46
  %104 = vst.msk [vmem:[#allocation2 + $0xd8] sm:$0xff] %vm82, %v47
  %105 = vst [vmem:[#allocation2 + $0xe0] sm:$0xff] %v48
  %106 = vst [vmem:[#allocation2 + $0xe8] sm:$0xff] %v49
  %107 = vst [vmem:[#allocation2 + $0xf0] sm:$0xff] %v50
  %108 = vst [vmem:[#allocation2 + $0xf8] sm:$0xff] %v51
  %109 = vst [vmem:[#allocation2 + $0x100] sm:$0xff] %v52
  %110 = vst [vmem:[#allocation2 + $0x108] sm:$0xff] %v53
  %111 = vst.msk [vmem:[#allocation2 + $0x110] sm:$0xff] %vm82, %v54
  %112 = vst [vmem:[#allocation2 + $0x118] sm:$0xff] %v55
  %113 = vst [vmem:[#allocation2 + $0x120] sm:$0xff] %v56
  %114 = vst [vmem:[#allocation2 + $0x128] sm:$0xff] %v57
  %115 = vst [vmem:[#allocation2 + $0x130] sm:$0xff] %v58
  %116 = vst [vmem:[#allocation2 + $0x138] sm:$0xff] %v59
  %117 = vst [vmem:[#allocation2 + $0x140] sm:$0xff] %v60
  %118 = vst.msk [vmem:[#allocation2 + $0x148] sm:$0xff] %vm82, %v61
  %119 = vst [vmem:[#allocation2 + $0x150] sm:$0xff] %v62
  %120 = vst [vmem:[#allocation2 + $0x158] sm:$0xff] %v63
  %121 = vst [vmem:[#allocation2 + $0x160] sm:$0xff] %v64
  %122 = vst [vmem:[#allocation2 + $0x168] sm:$0xff] %v65
  %123 = vst [vmem:[#allocation2 + $0x170] sm:$0xff] %v66
  %124 = vst [vmem:[#allocation2 + $0x178] sm:$0xff] %v67
  %125 = vst.msk [vmem:[#allocation2 + $0x180] sm:$0xff] %vm82, %v68
  %126 = vst [vmem:[#allocation2 + $0x188] sm:$0xff] %v69
  %127 = vst [vmem:[#allocation2 + $0x190] sm:$0xff] %v70
  %128 = vst [vmem:[#allocation2 + $0x198] sm:$0xff] %v71
  %129 = vst [vmem:[#allocation2 + $0x1a0] sm:$0xff] %v72
  %130 = vst [vmem:[#allocation2 + $0x1a8] sm:$0xff] %v73
  %131 = vst [vmem:[#allocation2 + $0x1b0] sm:$0xff] %v74
  %132 = vst.msk [vmem:[#allocation2 + $0x1b8] sm:$0xff] %vm82, %v75
  %v133 = vld [vmem:[%s1] sm:$0xff]
  %v134 = vld [vmem:[%s1 + $0x8] sm:$0xff]
  %v135 = vld [vmem:[%s1 + $0x10] sm:$0xff]
  %v136 = vld [vmem:[%s1 + $0x18] sm:$0xff]
  %v137 = vld [vmem:[%s1 + $0x20] sm:$0xff]
  %v138 = vld [vmem:[%s1 + $0x28] sm:$0xff]
  %v139 = vld [vmem:[%s1 + $0x30] sm:$0xff]
  %v140 = vld [vmem:[%s1 + $0x38] sm:$0xff]
  %v141 = vld [vmem:[%s1 + $0x40] sm:$0xff]
  %v142 = vld [vmem:[%s1 + $0x48] sm:$0xff]
  %v143 = vld [vmem:[%s1 + $0x50] sm:$0xff]
  %v144 = vld [vmem:[%s1 + $0x58] sm:$0xff]
  %v145 = vld [vmem:[%s1 + $0x60] sm:$0xff]
  %v146 = vld [vmem:[%s1 + $0x68] sm:$0xff]
  %v147 = vld [vmem:[%s1 + $0x70] sm:$0xff]
  %v148 = vld [vmem:[%s1 + $0x78] sm:$0xff]
  %v149 = vld [vmem:[%s1 + $0x80] sm:$0xff]
  %v150 = vld [vmem:[%s1 + $0x88] sm:$0xff]
  %v151 = vld [vmem:[%s1 + $0x90] sm:$0xff]
  %v152 = vld [vmem:[%s1 + $0x98] sm:$0xff]
  %v153 = vld [vmem:[%s1 + $0xa0] sm:$0xff]
  %v154 = vld [vmem:[%s1 + $0xa8] sm:$0xff]
  %v155 = vld [vmem:[%s1 + $0xb0] sm:$0xff]
  %v156 = vld [vmem:[%s1 + $0xb8] sm:$0xff]
  %v157 = vld [vmem:[%s1 + $0xc0] sm:$0xff]
  %v158 = vld [vmem:[%s1 + $0xc8] sm:$0xff]
  %v159 = vld [vmem:[%s1 + $0xd0] sm:$0xff]
  %v160 = vld [vmem:[%s1 + $0xd8] sm:$0xff]
  %v161 = vld [vmem:[%s1 + $0xe0] sm:$0xff]
  %v162 = vld [vmem:[%s1 + $0xe8] sm:$0xff]
  %v163 = vld [vmem:[%s1 + $0xf0] sm:$0xff]
  %v164 = vld [vmem:[%s1 + $0xf8] sm:$0xff]
  %v165 = vld [vmem:[%s1 + $0x100] sm:$0xff]
  %v166 = vld [vmem:[%s1 + $0x108] sm:$0xff]
  %v167 = vld [vmem:[%s1 + $0x110] sm:$0xff]
  %v168 = vld [vmem:[%s1 + $0x118] sm:$0xff]
  %v169 = vld [vmem:[%s1 + $0x120] sm:$0xff]
  %v170 = vld [vmem:[%s1 + $0x128] sm:$0xff]
  %v171 = vld [vmem:[%s1 + $0x130] sm:$0xff]
  %v172 = vld [vmem:[%s1 + $0x138] sm:$0xff]
  %v173 = vld [vmem:[%s1 + $0x140] sm:$0xff]
  %v174 = vld [vmem:[%s1 + $0x148] sm:$0xff]
  %v175 = vld [vmem:[%s1 + $0x150] sm:$0xff]
  %v176 = vld [vmem:[%s1 + $0x158] sm:$0xff]
  %v177 = vld [vmem:[%s1 + $0x160] sm:$0xff]
  %v178 = vld [vmem:[%s1 + $0x168] sm:$0xff]
  %v179 = vld [vmem:[%s1 + $0x170] sm:$0xff]
  %v180 = vld [vmem:[%s1 + $0x178] sm:$0xff]
  %v181 = vld [vmem:[%s1 + $0x180] sm:$0xff]
  %v182 = vld [vmem:[%s1 + $0x188] sm:$0xff]
  %v183 = vld [vmem:[%s1 + $0x190] sm:$0xff]
  %v184 = vld [vmem:[%s1 + $0x198] sm:$0xff]
  %v185 = vld [vmem:[%s1 + $0x1a0] sm:$0xff]
  %v186 = vld [vmem:[%s1 + $0x1a8] sm:$0xff]
  %v187 = vld [vmem:[%s1 + $0x1b0] sm:$0xff]
  %v188 = vld [vmem:[%s1 + $0x1b8] sm:$0xff]
  %v189 = vld [vmem:[%s1 + $0x1c0] sm:$0xff]
  %v190 = vld [vmem:[%s1 + $0x1c8] sm:$0xff]
  %v191 = vld [vmem:[%s1 + $0x1d0] sm:$0xff]
  %v192 = vld [vmem:[%s1 + $0x1d8] sm:$0xff]
  %v193 = vld [vmem:[%s1 + $0x1e0] sm:$0xff]
  %v194 = vld [vmem:[%s1 + $0x1e8] sm:$0xff]
  %v195 = vld [vmem:[%s1 + $0x1f0] sm:$0xff]
  %v196 = vld [vmem:[%s1 + $0x1f8] sm:$0xff]
  %v197 = vld [vmem:[%s1 + $0x200] sm:$0xff]
  %v198 = vld [vmem:[%s1 + $0x208] sm:$0xff]
  %v199 = vld [vmem:[%s1 + $0x210] sm:$0xff]
  %v200 = vld [vmem:[%s1 + $0x218] sm:$0xff]
  %v201 = vld [vmem:[%s1 + $0x220] sm:$0xff]
  %v202 = vld [vmem:[%s1 + $0x228] sm:$0xff]
  %v203 = vld [vmem:[%s1 + $0x230] sm:$0xff]
  %v204 = vld [vmem:[%s1 + $0x238] sm:$0xff]
  %v205 = vld [vmem:[%s1 + $0x240] sm:$0xff]
  %v206 = vld [vmem:[%s1 + $0x248] sm:$0xff]
  %v207 = vld [vmem:[%s1 + $0x250] sm:$0xff]
  %v208 = vld [vmem:[%s1 + $0x258] sm:$0xff]
  %v209 = vld [vmem:[%s1 + $0x260] sm:$0xff]
  %v210 = vld [vmem:[%s1 + $0x268] sm:$0xff]
  %v211 = vld [vmem:[%s1 + $0x270] sm:$0xff]
  %v212 = vld [vmem:[%s1 + $0x278] sm:$0xff]
  %v213 = vld [vmem:[%s1 + $0x280] sm:$0xff]
  %v214 = vld [vmem:[%s1 + $0x288] sm:$0xff]
  %v215 = vld [vmem:[%s1 + $0x290] sm:$0xff]
  %v216 = vld [vmem:[%s1 + $0x298] sm:$0xff]
  %v217 = vld [vmem:[%s1 + $0x2a0] sm:$0xff]
  %v218 = vld [vmem:[%s1 + $0x2a8] sm:$0xff]
  %v219 = vld [vmem:[%s1 + $0x2b0] sm:$0xff]
  %v220 = vld [vmem:[%s1 + $0x2b8] sm:$0xff]
  %v221 = vld [vmem:[%s1 + $0x2c0] sm:$0xff]
  %v222 = vld [vmem:[%s1 + $0x2c8] sm:$0xff]
  %v223 = vld [vmem:[%s1 + $0x2d0] sm:$0xff]
  %v224 = vld [vmem:[%s1 + $0x2d8] sm:$0xff]
  %v225 = vld [vmem:[%s1 + $0x2e0] sm:$0xff]
  %v226 = vld [vmem:[%s1 + $0x2e8] sm:$0xff]
  %v227 = vld [vmem:[%s1 + $0x2f0] sm:$0xff]
  %v228 = vld [vmem:[%s1 + $0x2f8] sm:$0xff]
  %v229 = vld [vmem:[%s1 + $0x300] sm:$0xff]
  %v230 = vld [vmem:[%s1 + $0x308] sm:$0xff]
  %v231 = vld [vmem:[%s1 + $0x310] sm:$0xff]
  %v232 = vld [vmem:[%s1 + $0x318] sm:$0xff]
  %v233 = vld [vmem:[%s1 + $0x320] sm:$0xff]
  %v234 = vld [vmem:[%s1 + $0x328] sm:$0xff]
  %v235 = vld [vmem:[%s1 + $0x330] sm:$0xff]
  %v236 = vld [vmem:[%s1 + $0x338] sm:$0xff]
  %v237 = vld [vmem:[%s1 + $0x340] sm:$0xff]
  %v238 = vld [vmem:[%s1 + $0x348] sm:$0xff]
  %v239 = vld [vmem:[%s1 + $0x350] sm:$0xff]
  %v240 = vld [vmem:[%s1 + $0x358] sm:$0xff]
  %v241 = vld [vmem:[%s1 + $0x360] sm:$0xff]
  %v242 = vld [vmem:[%s1 + $0x368] sm:$0xff]
  %v243 = vld [vmem:[%s1 + $0x370] sm:$0xff]
  %v244 = vld [vmem:[%s1 + $0x378] sm:$0xff]
  %245 = vst [vmem:[#allocation2 + $0x1c0] sm:$0xff] %v133
  %246 = vst [vmem:[#allocation2 + $0x1c8] sm:$0xff] %v134
  %247 = vst [vmem:[#allocation2 + $0x1d0] sm:$0xff] %v135
  %248 = vst [vmem:[#allocation2 + $0x1d8] sm:$0xff] %v136
  %249 = vst [vmem:[#allocation2 + $0x1e0] sm:$0xff] %v137
  %250 = vst [vmem:[#allocation2 + $0x1e8] sm:$0xff] %v138
  %251 = vst.msk [vmem:[#allocation2 + $0x1f0] sm:$0xff] %vm82, %v139
  %252 = vst [vmem:[#allocation2 + $0x1f8] sm:$0xff] %v140
  %253 = vst [vmem:[#allocation2 + $0x200] sm:$0xff] %v141
  %254 = vst [vmem:[#allocation2 + $0x208] sm:$0xff] %v142
  %255 = vst [vmem:[#allocation2 + $0x210] sm:$0xff] %v143
  %256 = vst [vmem:[#allocation2 + $0x218] sm:$0xff] %v144
  %257 = vst [vmem:[#allocation2 + $0x220] sm:$0xff] %v145
  %258 = vst.msk [vmem:[#allocation2 + $0x228] sm:$0xff] %vm82, %v146
  %259 = vst [vmem:[#allocation2 + $0x230] sm:$0xff] %v147
  %260 = vst [vmem:[#allocation2 + $0x238] sm:$0xff] %v148
  %261 = vst [vmem:[#allocation2 + $0x240] sm:$0xff] %v149
  %262 = vst [vmem:[#allocation2 + $0x248] sm:$0xff] %v150
  %263 = vst [vmem:[#allocation2 + $0x250] sm:$0xff] %v151
  %264 = vst [vmem:[#allocation2 + $0x258] sm:$0xff] %v152
  %265 = vst.msk [vmem:[#allocation2 + $0x260] sm:$0xff] %vm82, %v153
  %266 = vst [vmem:[#allocation2 + $0x268] sm:$0xff] %v154
  %267 = vst [vmem:[#allocation2 + $0x270] sm:$0xff] %v155
  %268 = vst [vmem:[#allocation2 + $0x278] sm:$0xff] %v156
  %269 = vst [vmem:[#allocation2 + $0x280] sm:$0xff] %v157
  %270 = vst [vmem:[#allocation2 + $0x288] sm:$0xff] %v158
  %271 = vst [vmem:[#allocation2 + $0x290] sm:$0xff] %v159
  %272 = vst.msk [vmem:[#allocation2 + $0x298] sm:$0xff] %vm82, %v160
  %273 = vst [vmem:[#allocation2 + $0x2a0] sm:$0xff] %v161
  %274 = vst [vmem:[#allocation2 + $0x2a8] sm:$0xff] %v162
  %275 = vst [vmem:[#allocation2 + $0x2b0] sm:$0xff] %v163
  %276 = vst [vmem:[#allocation2 + $0x2b8] sm:$0xff] %v164
  %277 = vst [vmem:[#allocation2 + $0x2c0] sm:$0xff] %v165
  %278 = vst [vmem:[#allocation2 + $0x2c8] sm:$0xff] %v166
  %279 = vst.msk [vmem:[#allocation2 + $0x2d0] sm:$0xff] %vm82, %v167
  %280 = vst [vmem:[#allocation2 + $0x2d8] sm:$0xff] %v168
  %281 = vst [vmem:[#allocation2 + $0x2e0] sm:$0xff] %v169
  %282 = vst [vmem:[#allocation2 + $0x2e8] sm:$0xff] %v170
  %283 = vst [vmem:[#allocation2 + $0x2f0] sm:$0xff] %v171
  %284 = vst [vmem:[#allocation2 + $0x2f8] sm:$0xff] %v172
  %285 = vst [vmem:[#allocation2 + $0x300] sm:$0xff] %v173
  %286 = vst.msk [vmem:[#allocation2 + $0x308] sm:$0xff] %vm82, %v174
  %287 = vst [vmem:[#allocation2 + $0x310] sm:$0xff] %v175
  %288 = vst [vmem:[#allocation2 + $0x318] sm:$0xff] %v176
  %289 = vst [vmem:[#allocation2 + $0x320] sm:$0xff] %v177
  %290 = vst [vmem:[#allocation2 + $0x328] sm:$0xff] %v178
  %291 = vst [vmem:[#allocation2 + $0x330] sm:$0xff] %v179
  %292 = vst [vmem:[#allocation2 + $0x338] sm:$0xff] %v180
  %293 = vst.msk [vmem:[#allocation2 + $0x340] sm:$0xff] %vm82, %v181
  %294 = vst [vmem:[#allocation2 + $0x348] sm:$0xff] %v182
  %295 = vst [vmem:[#allocation2 + $0x350] sm:$0xff] %v183
  %296 = vst [vmem:[#allocation2 + $0x358] sm:$0xff] %v184
  %297 = vst [vmem:[#allocation2 + $0x360] sm:$0xff] %v185
  %298 = vst [vmem:[#allocation2 + $0x368] sm:$0xff] %v186
  %299 = vst [vmem:[#allocation2 + $0x370] sm:$0xff] %v187
  %300 = vst.msk [vmem:[#allocation2 + $0x378] sm:$0xff] %vm82, %v188
  %301 = vst [vmem:[#allocation2 + $0x380] sm:$0xff] %v189
  %302 = vst [vmem:[#allocation2 + $0x388] sm:$0xff] %v190
  %303 = vst [vmem:[#allocation2 + $0x390] sm:$0xff] %v191
  %304 = vst [vmem:[#allocation2 + $0x398] sm:$0xff] %v192
  %305 = vst [vmem:[#allocation2 + $0x3a0] sm:$0xff] %v193
  %306 = vst [vmem:[#allocation2 + $0x3a8] sm:$0xff] %v194
  %307 = vst.msk [vmem:[#allocation2 + $0x3b0] sm:$0xff] %vm82, %v195
  %308 = vst [vmem:[#allocation2 + $0x3b8] sm:$0xff] %v196
  %309 = vst [vmem:[#allocation2 + $0x3c0] sm:$0xff] %v197
  %310 = vst [vmem:[#allocation2 + $0x3c8] sm:$0xff] %v198
  %311 = vst [vmem:[#allocation2 + $0x3d0] sm:$0xff] %v199
  %312 = vst [vmem:[#allocation2 + $0x3d8] sm:$0xff] %v200
  %313 = vst [vmem:[#allocation2 + $0x3e0] sm:$0xff] %v201
  %314 = vst.msk [vmem:[#allocation2 + $0x3e8] sm:$0xff] %vm82, %v202
  %315 = vst [vmem:[#allocation2 + $0x3f0] sm:$0xff] %v203
  %316 = vst [vmem:[#allocation2 + $0x3f8] sm:$0xff] %v204
  %317 = vst [vmem:[#allocation2 + $0x400] sm:$0xff] %v205
  %318 = vst [vmem:[#allocation2 + $0x408] sm:$0xff] %v206
  %319 = vst [vmem:[#allocation2 + $0x410] sm:$0xff] %v207
  %320 = vst [vmem:[#allocation2 + $0x418] sm:$0xff] %v208
  %321 = vst.msk [vmem:[#allocation2 + $0x420] sm:$0xff] %vm82, %v209
  %322 = vst [vmem:[#allocation2 + $0x428] sm:$0xff] %v210
  %323 = vst [vmem:[#allocation2 + $0x430] sm:$0xff] %v211
  %324 = vst [vmem:[#allocation2 + $0x438] sm:$0xff] %v212
  %325 = vst [vmem:[#allocation2 + $0x440] sm:$0xff] %v213
  %326 = vst [vmem:[#allocation2 + $0x448] sm:$0xff] %v214
  %327 = vst [vmem:[#allocation2 + $0x450] sm:$0xff] %v215
  %328 = vst.msk [vmem:[#allocation2 + $0x458] sm:$0xff] %vm82, %v216
  %329 = vst [vmem:[#allocation2 + $0x460] sm:$0xff] %v217
  %330 = vst [vmem:[#allocation2 + $0x468] sm:$0xff] %v218
  %331 = vst [vmem:[#allocation2 + $0x470] sm:$0xff] %v219
  %332 = vst [vmem:[#allocation2 + $0x478] sm:$0xff] %v220
  %333 = vst [vmem:[#allocation2 + $0x480] sm:$0xff] %v221
  %334 = vst [vmem:[#allocation2 + $0x488] sm:$0xff] %v222
  %335 = vst.msk [vmem:[#allocation2 + $0x490] sm:$0xff] %vm82, %v223
  %336 = vst [vmem:[#allocation2 + $0x498] sm:$0xff] %v224
  %337 = vst [vmem:[#allocation2 + $0x4a0] sm:$0xff] %v225
  %338 = vst [vmem:[#allocation2 + $0x4a8] sm:$0xff] %v226
  %339 = vst [vmem:[#allocation2 + $0x4b0] sm:$0xff] %v227
  %340 = vst [vmem:[#allocation2 + $0x4b8] sm:$0xff] %v228
  %341 = vst [vmem:[#allocation2 + $0x4c0] sm:$0xff] %v229
  %342 = vst.msk [vmem:[#allocation2 + $0x4c8] sm:$0xff] %vm82, %v230
  %343 = vst [vmem:[#allocation2 + $0x4d0] sm:$0xff] %v231
  %344 = vst [vmem:[#allocation2 + $0x4d8] sm:$0xff] %v232
  %345 = vst [vmem:[#allocation2 + $0x4e0] sm:$0xff] %v233
  %346 = vst [vmem:[#allocation2 + $0x4e8] sm:$0xff] %v234
  %347 = vst [vmem:[#allocation2 + $0x4f0] sm:$0xff] %v235
  %348 = vst [vmem:[#allocation2 + $0x4f8] sm:$0xff] %v236
  %349 = vst.msk [vmem:[#allocation2 + $0x500] sm:$0xff] %vm82, %v237
  %350 = vst [vmem:[#allocation2 + $0x508] sm:$0xff] %v238
  %351 = vst [vmem:[#allocation2 + $0x510] sm:$0xff] %v239
  %352 = vst [vmem:[#allocation2 + $0x518] sm:$0xff] %v240
  %353 = vst [vmem:[#allocation2 + $0x520] sm:$0xff] %v241
  %354 = vst [vmem:[#allocation2 + $0x528] sm:$0xff] %v242
  %355 = vst [vmem:[#allocation2 + $0x530] sm:$0xff] %v243
  %356 = vst.msk [vmem:[#allocation2 + $0x538] sm:$0xff] %vm82, %v244
  %v357 = vld [vmem:[%s2] sm:$0xff]
  %v358 = vld [vmem:[%s2 + $0x8] sm:$0xff]
  %v359 = vld [vmem:[%s2 + $0x10] sm:$0xff]
  %v360 = vld [vmem:[%s2 + $0x18] sm:$0xff]
  %v361 = vld [vmem:[%s2 + $0x20] sm:$0xff]
  %v362 = vld [vmem:[%s2 + $0x28] sm:$0xff]
  %v363 = vld [vmem:[%s2 + $0x30] sm:$0xff]
  %v364 = vld [vmem:[%s2 + $0x38] sm:$0xff]
  %v365 = vld [vmem:[%s2 + $0x40] sm:$0xff]
  %v366 = vld [vmem:[%s2 + $0x48] sm:$0xff]
  %v367 = vld [vmem:[%s2 + $0x50] sm:$0xff]
  %v368 = vld [vmem:[%s2 + $0x58] sm:$0xff]
  %v369 = vld [vmem:[%s2 + $0x60] sm:$0xff]
  %v370 = vld [vmem:[%s2 + $0x68] sm:$0xff]
  %v371 = vld [vmem:[%s2 + $0x70] sm:$0xff]
  %v372 = vld [vmem:[%s2 + $0x78] sm:$0xff]
  %v373 = vld [vmem:[%s2 + $0x80] sm:$0xff]
  %v374 = vld [vmem:[%s2 + $0x88] sm:$0xff]
  %v375 = vld [vmem:[%s2 + $0x90] sm:$0xff]
  %v376 = vld [vmem:[%s2 + $0x98] sm:$0xff]
  %v377 = vld [vmem:[%s2 + $0xa0] sm:$0xff]
  %v378 = vld [vmem:[%s2 + $0xa8] sm:$0xff]
  %v379 = vld [vmem:[%s2 + $0xb0] sm:$0xff]
  %v380 = vld [vmem:[%s2 + $0xb8] sm:$0xff]
  %v381 = vld [vmem:[%s2 + $0xc0] sm:$0xff]
  %v382 = vld [vmem:[%s2 + $0xc8] sm:$0xff]
  %v383 = vld [vmem:[%s2 + $0xd0] sm:$0xff]
  %v384 = vld [vmem:[%s2 + $0xd8] sm:$0xff]
  %385 = vst [vmem:[#allocation2 + $0x540] sm:$0xff] %v357
  %386 = vst [vmem:[#allocation2 + $0x548] sm:$0xff] %v358
  %387 = vst [vmem:[#allocation2 + $0x550] sm:$0xff] %v359
  %388 = vst [vmem:[#allocation2 + $0x558] sm:$0xff] %v360
  %389 = vst [vmem:[#allocation2 + $0x560] sm:$0xff] %v361
  %390 = vst [vmem:[#allocation2 + $0x568] sm:$0xff] %v362
  %391 = vst.msk [vmem:[#allocation2 + $0x570] sm:$0xff] %vm82, %v363
  %392 = vst [vmem:[#allocation2 + $0x578] sm:$0xff] %v364
  %393 = vst [vmem:[#allocation2 + $0x580] sm:$0xff] %v365
  %394 = vst [vmem:[#allocation2 + $0x588] sm:$0xff] %v366
  %395 = vst [vmem:[#allocation2 + $0x590] sm:$0xff] %v367
  %396 = vst [vmem:[#allocation2 + $0x598] sm:$0xff] %v368
  %397 = vst [vmem:[#allocation2 + $0x5a0] sm:$0xff] %v369
  %398 = vst.msk [vmem:[#allocation2 + $0x5a8] sm:$0xff] %vm82, %v370
  %399 = vst [vmem:[#allocation2 + $0x5b0] sm:$0xff] %v371
  %400 = vst [vmem:[#allocation2 + $0x5b8] sm:$0xff] %v372
  %401 = vst [vmem:[#allocation2 + $0x5c0] sm:$0xff] %v373
  %402 = vst [vmem:[#allocation2 + $0x5c8] sm:$0xff] %v374
  %403 = vst [vmem:[#allocation2 + $0x5d0] sm:$0xff] %v375
  %404 = vst [vmem:[#allocation2 + $0x5d8] sm:$0xff] %v376
  %405 = vst.msk [vmem:[#allocation2 + $0x5e0] sm:$0xff] %vm82, %v377
  %406 = vst [vmem:[#allocation2 + $0x5e8] sm:$0xff] %v378
  %407 = vst [vmem:[#allocation2 + $0x5f0] sm:$0xff] %v379
  %408 = vst [vmem:[#allocation2 + $0x5f8] sm:$0xff] %v380
  %409 = vst [vmem:[#allocation2 + $0x600] sm:$0xff] %v381
  %410 = vst [vmem:[#allocation2 + $0x608] sm:$0xff] %v382
  %411 = vst [vmem:[#allocation2 + $0x610] sm:$0xff] %v383
  %412 = vst.msk [vmem:[#allocation2 + $0x618] sm:$0xff] %vm82, %v384
  %v413 = vld [vmem:[%s3] sm:$0xff]
  %v414 = vld [vmem:[%s3 + $0x8] sm:$0xff]
  %v415 = vld [vmem:[%s3 + $0x10] sm:$0xff]
  %v416 = vld [vmem:[%s3 + $0x18] sm:$0xff]
  %v417 = vld [vmem:[%s3 + $0x20] sm:$0xff]
  %v418 = vld [vmem:[%s3 + $0x28] sm:$0xff]
  %v419 = vld [vmem:[%s3 + $0x30] sm:$0xff]
  %v420 = vld [vmem:[%s3 + $0x38] sm:$0xff]
  %v421 = vld [vmem:[%s3 + $0x40] sm:$0xff]
  %v422 = vld [vmem:[%s3 + $0x48] sm:$0xff]
  %v423 = vld [vmem:[%s3 + $0x50] sm:$0xff]
  %v424 = vld [vmem:[%s3 + $0x58] sm:$0xff]
  %v425 = vld [vmem:[%s3 + $0x60] sm:$0xff]
  %v426 = vld [vmem:[%s3 + $0x68] sm:$0xff]
  %v427 = vld [vmem:[%s3 + $0x70] sm:$0xff]
  %v428 = vld [vmem:[%s3 + $0x78] sm:$0xff]
  %v429 = vld [vmem:[%s3 + $0x80] sm:$0xff]
  %v430 = vld [vmem:[%s3 + $0x88] sm:$0xff]
  %v431 = vld [vmem:[%s3 + $0x90] sm:$0xff]
  %v432 = vld [vmem:[%s3 + $0x98] sm:$0xff]
  %v433 = vld [vmem:[%s3 + $0xa0] sm:$0xff]
  %v434 = vld [vmem:[%s3 + $0xa8] sm:$0xff]
  %v435 = vld [vmem:[%s3 + $0xb0] sm:$0xff]
  %v436 = vld [vmem:[%s3 + $0xb8] sm:$0xff]
  %v437 = vld [vmem:[%s3 + $0xc0] sm:$0xff]
  %v438 = vld [vmem:[%s3 + $0xc8] sm:$0xff]
  %v439 = vld [vmem:[%s3 + $0xd0] sm:$0xff]
  %v440 = vld [vmem:[%s3 + $0xd8] sm:$0xff]
  %441 = vst [vmem:[#allocation2 + $0x620] sm:$0xff] %v413
  %442 = vst [vmem:[#allocation2 + $0x628] sm:$0xff] %v414
  %443 = vst [vmem:[#allocation2 + $0x630] sm:$0xff] %v415
  %444 = vst [vmem:[#allocation2 + $0x638] sm:$0xff] %v416
  %445 = vst [vmem:[#allocation2 + $0x640] sm:$0xff] %v417
  %446 = vst [vmem:[#allocation2 + $0x648] sm:$0xff] %v418
  %447 = vst.msk [vmem:[#allocation2 + $0x650] sm:$0xff] %vm82, %v419
  %448 = vst [vmem:[#allocation2 + $0x658] sm:$0xff] %v420
  %449 = vst [vmem:[#allocation2 + $0x660] sm:$0xff] %v421
  %450 = vst [vmem:[#allocation2 + $0x668] sm:$0xff] %v422
  %451 = vst [vmem:[#allocation2 + $0x670] sm:$0xff] %v423
  %452 = vst [vmem:[#allocation2 + $0x678] sm:$0xff] %v424
  %453 = vst [vmem:[#allocation2 + $0x680] sm:$0xff] %v425
  %454 = vst.msk [vmem:[#allocation2 + $0x688] sm:$0xff] %vm82, %v426
  %455 = vst [vmem:[#allocation2 + $0x690] sm:$0xff] %v427
  %456 = vst [vmem:[#allocation2 + $0x698] sm:$0xff] %v428
  %457 = vst [vmem:[#allocation2 + $0x6a0] sm:$0xff] %v429
  %458 = vst [vmem:[#allocation2 + $0x6a8] sm:$0xff] %v430
  %459 = vst [vmem:[#allocation2 + $0x6b0] sm:$0xff] %v431
  %460 = vst [vmem:[#allocation2 + $0x6b8] sm:$0xff] %v432
  %461 = vst.msk [vmem:[#allocation2 + $0x6c0] sm:$0xff] %vm82, %v433
  %462 = vst [vmem:[#allocation2 + $0x6c8] sm:$0xff] %v434
  %463 = vst [vmem:[#allocation2 + $0x6d0] sm:$0xff] %v435
  %464 = vst [vmem:[#allocation2 + $0x6d8] sm:$0xff] %v436
  %465 = vst [vmem:[#allocation2 + $0x6e0] sm:$0xff] %v437
  %466 = vst [vmem:[#allocation2 + $0x6e8] sm:$0xff] %v438
  %467 = vst [vmem:[#allocation2 + $0x6f0] sm:$0xff] %v439
  %468 = vst.msk [vmem:[#allocation2 + $0x6f8] sm:$0xff] %vm82, %v440
  %v469 = vld [vmem:[%s4] sm:$0xff]
  %v470 = vld [vmem:[%s4 + $0x8] sm:$0xff]
  %v471 = vld [vmem:[%s4 + $0x10] sm:$0xff]
  %v472 = vld [vmem:[%s4 + $0x18] sm:$0xff]
  %v473 = vld [vmem:[%s4 + $0x20] sm:$0xff]
  %v474 = vld [vmem:[%s4 + $0x28] sm:$0xff]
  %v475 = vld [vmem:[%s4 + $0x30] sm:$0xff]
  %v476 = vld [vmem:[%s4 + $0x38] sm:$0xff]
  %v477 = vld [vmem:[%s4 + $0x40] sm:$0xff]
  %v478 = vld [vmem:[%s4 + $0x48] sm:$0xff]
  %v479 = vld [vmem:[%s4 + $0x50] sm:$0xff]
  %v480 = vld [vmem:[%s4 + $0x58] sm:$0xff]
  %v481 = vld [vmem:[%s4 + $0x60] sm:$0xff]
  %v482 = vld [vmem:[%s4 + $0x68] sm:$0xff]
  %v483 = vld [vmem:[%s4 + $0x70] sm:$0xff]
  %v484 = vld [vmem:[%s4 + $0x78] sm:$0xff]
  %v485 = vld [vmem:[%s4 + $0x80] sm:$0xff]
  %v486 = vld [vmem:[%s4 + $0x88] sm:$0xff]
  %v487 = vld [vmem:[%s4 + $0x90] sm:$0xff]
  %v488 = vld [vmem:[%s4 + $0x98] sm:$0xff]
  %v489 = vld [vmem:[%s4 + $0xa0] sm:$0xff]
  %v490 = vld [vmem:[%s4 + $0xa8] sm:$0xff]
  %v491 = vld [vmem:[%s4 + $0xb0] sm:$0xff]
  %v492 = vld [vmem:[%s4 + $0xb8] sm:$0xff]
  %v493 = vld [vmem:[%s4 + $0xc0] sm:$0xff]
  %v494 = vld [vmem:[%s4 + $0xc8] sm:$0xff]
  %v495 = vld [vmem:[%s4 + $0xd0] sm:$0xff]
  %v496 = vld [vmem:[%s4 + $0xd8] sm:$0xff]
  %v497 = vld [vmem:[%s4 + $0xe0] sm:$0xff]
  %v498 = vld [vmem:[%s4 + $0xe8] sm:$0xff]
  %v499 = vld [vmem:[%s4 + $0xf0] sm:$0xff]
  %v500 = vld [vmem:[%s4 + $0xf8] sm:$0xff]
  %v501 = vld [vmem:[#allocation2] sm:$0xff]
  %v502 = vld [vmem:[#allocation2 + $0x8] sm:$0xff]
  %v503 = vld [vmem:[#allocation2 + $0x10] sm:$0xff]
  %v504 = vld [vmem:[#allocation2 + $0x18] sm:$0xff]
  %v505 = vld [vmem:[#allocation2 + $0x20] sm:$0xff]
  %v506 = vld [vmem:[#allocation2 + $0x28] sm:$0xff]
  %v507 = vld [vmem:[#allocation2 + $0x30] sm:$0xff]
  %v508 = vld [vmem:[#allocation2 + $0x38] sm:$0xff]
  %v509 = vld [vmem:[#allocation2 + $0x40] sm:$0xff]
  %v510 = vld [vmem:[#allocation2 + $0x48] sm:$0xff]
  %v511 = vld [vmem:[#allocation2 + $0x50] sm:$0xff]
  %v512 = vld [vmem:[#allocation2 + $0x58] sm:$0xff]
  %v513 = vld [vmem:[#allocation2 + $0x60] sm:$0xff]
  %v514 = vld [vmem:[#allocation2 + $0x68] sm:$0xff]
  %v515 = vld [vmem:[#allocation2 + $0x70] sm:$0xff]
  %v516 = vld [vmem:[#allocation2 + $0x78] sm:$0xff]
  %v517 = vld [vmem:[#allocation2 + $0x80] sm:$0xff]
  %v518 = vld [vmem:[#allocation2 + $0x88] sm:$0xff]
  %v519 = vld [vmem:[#allocation2 + $0x90] sm:$0xff]
  %v520 = vld [vmem:[#allocation2 + $0x98] sm:$0xff]
  %v521 = vld [vmem:[#allocation2 + $0xa0] sm:$0xff]
  %v522 = vld [vmem:[#allocation2 + $0xa8] sm:$0xff]
  %v523 = vld [vmem:[#allocation2 + $0xb0] sm:$0xff]
  %v524 = vld [vmem:[#allocation2 + $0xb8] sm:$0xff]
  %v525 = vld [vmem:[#allocation2 + $0xc0] sm:$0xff]
  %v526 = vld [vmem:[#allocation2 + $0xc8] sm:$0xff]
  %v527 = vld [vmem:[#allocation2 + $0xd0] sm:$0xff]
  %v528 = vld [vmem:[#allocation2 + $0xd8] sm:$0xff]
  %v529 = vld [vmem:[#allocation2 + $0xe0] sm:$0xff]
  %v530 = vld [vmem:[#allocation2 + $0xe8] sm:$0xff]
  %v531 = vld [vmem:[#allocation2 + $0xf0] sm:$0xff]
  %v532 = vld [vmem:[#allocation2 + $0xf8] sm:$0xff]
  %v533 = vld [vmem:[#allocation2 + $0x100] sm:$0xff]
  %v534 = vld [vmem:[#allocation2 + $0x108] sm:$0xff]
  %v535 = vld [vmem:[#allocation2 + $0x110] sm:$0xff]
  %v536 = vld [vmem:[#allocation2 + $0x118] sm:$0xff]
  %v537 = vld [vmem:[#allocation2 + $0x120] sm:$0xff]
  %v538 = vld [vmem:[#allocation2 + $0x128] sm:$0xff]
  %v539 = vld [vmem:[#allocation2 + $0x130] sm:$0xff]
  %v540 = vld [vmem:[#allocation2 + $0x138] sm:$0xff]
  %v541 = vld [vmem:[#allocation2 + $0x140] sm:$0xff]
  %v542 = vld [vmem:[#allocation2 + $0x148] sm:$0xff]
  %v543 = vld [vmem:[#allocation2 + $0x150] sm:$0xff]
  %v544 = vld [vmem:[#allocation2 + $0x158] sm:$0xff]
  %v545 = vld [vmem:[#allocation2 + $0x160] sm:$0xff]
  %v546 = vld [vmem:[#allocation2 + $0x168] sm:$0xff]
  %v547 = vld [vmem:[#allocation2 + $0x170] sm:$0xff]
  %v548 = vld [vmem:[#allocation2 + $0x178] sm:$0xff]
  %v549 = vld [vmem:[#allocation2 + $0x180] sm:$0xff]
  %v550 = vld [vmem:[#allocation2 + $0x188] sm:$0xff]
  %v551 = vld [vmem:[#allocation2 + $0x190] sm:$0xff]
  %v552 = vld [vmem:[#allocation2 + $0x198] sm:$0xff]
  %v553 = vld [vmem:[#allocation2 + $0x1a0] sm:$0xff]
  %v554 = vld [vmem:[#allocation2 + $0x1a8] sm:$0xff]
  %v555 = vld [vmem:[#allocation2 + $0x1b0] sm:$0xff]
  %v556 = vld [vmem:[#allocation2 + $0x1b8] sm:$0xff]
  %v557 = vld [vmem:[#allocation2 + $0x1c0] sm:$0xff]
  %v558 = vld [vmem:[#allocation2 + $0x1c8] sm:$0xff]
  %v559 = vld [vmem:[#allocation2 + $0x1d0] sm:$0xff]
  %v560 = vld [vmem:[#allocation2 + $0x1d8] sm:$0xff]
  %v561 = vld [vmem:[#allocation2 + $0x1e0] sm:$0xff]
  %v562 = vld [vmem:[#allocation2 + $0x1e8] sm:$0xff]
  %v563 = vld [vmem:[#allocation2 + $0x1f0] sm:$0xff]
  %v564 = vld [vmem:[#allocation2 + $0x1f8] sm:$0xff]
  %v565 = vld [vmem:[#allocation2 + $0x200] sm:$0xff]
  %v566 = vld [vmem:[#allocation2 + $0x208] sm:$0xff]
  %v567 = vld [vmem:[#allocation2 + $0x210] sm:$0xff]
  %v568 = vld [vmem:[#allocation2 + $0x218] sm:$0xff]
  %v569 = vld [vmem:[#allocation2 + $0x220] sm:$0xff]
  %v570 = vld [vmem:[#allocation2 + $0x228] sm:$0xff]
  %v571 = vld [vmem:[#allocation2 + $0x230] sm:$0xff]
  %v572 = vld [vmem:[#allocation2 + $0x238] sm:$0xff]
  %v573 = vld [vmem:[#allocation2 + $0x240] sm:$0xff]
  %v574 = vld [vmem:[#allocation2 + $0x248] sm:$0xff]
  %v575 = vld [vmem:[#allocation2 + $0x250] sm:$0xff]
  %v576 = vld [vmem:[#allocation2 + $0x258] sm:$0xff]
  %v577 = vld [vmem:[#allocation2 + $0x260] sm:$0xff]
  %v578 = vld [vmem:[#allocation2 + $0x268] sm:$0xff]
  %v579 = vld [vmem:[#allocation2 + $0x270] sm:$0xff]
  %v580 = vld [vmem:[#allocation2 + $0x278] sm:$0xff]
  %v581 = vld [vmem:[#allocation2 + $0x280] sm:$0xff]
  %v582 = vld [vmem:[#allocation2 + $0x288] sm:$0xff]
  %v583 = vld [vmem:[#allocation2 + $0x290] sm:$0xff]
  %v584 = vld [vmem:[#allocation2 + $0x298] sm:$0xff]
  %v585 = vld [vmem:[#allocation2 + $0x2a0] sm:$0xff]
  %v586 = vld [vmem:[#allocation2 + $0x2a8] sm:$0xff]
  %v587 = vld [vmem:[#allocation2 + $0x2b0] sm:$0xff]
  %v588 = vld [vmem:[#allocation2 + $0x2b8] sm:$0xff]
  %v589 = vld [vmem:[#allocation2 + $0x2c0] sm:$0xff]
  %v590 = vld [vmem:[#allocation2 + $0x2c8] sm:$0xff]
  %v591 = vld [vmem:[#allocation2 + $0x2d0] sm:$0xff]
  %v592 = vld [vmem:[#allocation2 + $0x2d8] sm:$0xff]
  %v593 = vld [vmem:[#allocation2 + $0x2e0] sm:$0xff]
  %v594 = vld [vmem:[#allocation2 + $0x2e8] sm:$0xff]
  %v595 = vld [vmem:[#allocation2 + $0x2f0] sm:$0xff]
  %v596 = vld [vmem:[#allocation2 + $0x2f8] sm:$0xff]
  %v597 = vld [vmem:[#allocation2 + $0x300] sm:$0xff]
  %v598 = vld [vmem:[#allocation2 + $0x308] sm:$0xff]
  %v599 = vld [vmem:[#allocation2 + $0x310] sm:$0xff]
  %v600 = vld [vmem:[#allocation2 + $0x318] sm:$0xff]
  %v601 = vld [vmem:[#allocation2 + $0x320] sm:$0xff]
  %v602 = vld [vmem:[#allocation2 + $0x328] sm:$0xff]
  %v603 = vld [vmem:[#allocation2 + $0x330] sm:$0xff]
  %v604 = vld [vmem:[#allocation2 + $0x338] sm:$0xff]
  %v605 = vld [vmem:[#allocation2 + $0x340] sm:$0xff]
  %v606 = vld [vmem:[#allocation2 + $0x348] sm:$0xff]
  %v607 = vld [vmem:[#allocation2 + $0x350] sm:$0xff]
  %v608 = vld [vmem:[#allocation2 + $0x358] sm:$0xff]
  %v609 = vld [vmem:[#allocation2 + $0x360] sm:$0xff]
  %v610 = vld [vmem:[#allocation2 + $0x368] sm:$0xff]
  %v611 = vld [vmem:[#allocation2 + $0x370] sm:$0xff]
  %v612 = vld [vmem:[#allocation2 + $0x378] sm:$0xff]
  %v613 = vld [vmem:[#allocation2 + $0x380] sm:$0xff]
  %v614 = vld [vmem:[#allocation2 + $0x388] sm:$0xff]
  %v615 = vld [vmem:[#allocation2 + $0x390] sm:$0xff]
  %v616 = vld [vmem:[#allocation2 + $0x398] sm:$0xff]
  %v617 = vld [vmem:[#allocation2 + $0x3a0] sm:$0xff]
  %v618 = vld [vmem:[#allocation2 + $0x3a8] sm:$0xff]
  %v619 = vld [vmem:[#allocation2 + $0x3b0] sm:$0xff]
  %v620 = vld [vmem:[#allocation2 + $0x3b8] sm:$0xff]
  %v621 = vld [vmem:[#allocation2 + $0x3c0] sm:$0xff]
  %v622 = vld [vmem:[#allocation2 + $0x3c8] sm:$0xff]
  %v623 = vld [vmem:[#allocation2 + $0x3d0] sm:$0xff]
  %v624 = vld [vmem:[#allocation2 + $0x3d8] sm:$0xff]
  %v625 = vld [vmem:[#allocation2 + $0x3e0] sm:$0xff]
  %v626 = vld [vmem:[#allocation2 + $0x3e8] sm:$0xff]
  %v627 = vld [vmem:[#allocation2 + $0x3f0] sm:$0xff]
  %v628 = vld [vmem:[#allocation2 + $0x3f8] sm:$0xff]
  %v629 = vld [vmem:[#allocation2 + $0x400] sm:$0xff]
  %v630 = vld [vmem:[#allocation2 + $0x408] sm:$0xff]
  %v631 = vld [vmem:[#allocation2 + $0x410] sm:$0xff]
  %v632 = vld [vmem:[#allocation2 + $0x418] sm:$0xff]
  %v633 = vld [vmem:[#allocation2 + $0x420] sm:$0xff]
  %v634 = vld [vmem:[#allocation2 + $0x428] sm:$0xff]
  %v635 = vld [vmem:[#allocation2 + $0x430] sm:$0xff]
  %v636 = vld [vmem:[#allocation2 + $0x438] sm:$0xff]
  %v637 = vld [vmem:[#allocation2 + $0x440] sm:$0xff]
  %v638 = vld [vmem:[#allocation2 + $0x448] sm:$0xff]
  %v639 = vld [vmem:[#allocation2 + $0x450] sm:$0xff]
  %v640 = vld [vmem:[#allocation2 + $0x458] sm:$0xff]
  %v641 = vld [vmem:[#allocation2 + $0x460] sm:$0xff]
  %v642 = vld [vmem:[#allocation2 + $0x468] sm:$0xff]
  %v643 = vld [vmem:[#allocation2 + $0x470] sm:$0xff]
  %v644 = vld [vmem:[#allocation2 + $0x478] sm:$0xff]
  %v645 = vld [vmem:[#allocation2 + $0x480] sm:$0xff]
  %v646 = vld [vmem:[#allocation2 + $0x488] sm:$0xff]
  %v647 = vld [vmem:[#allocation2 + $0x490] sm:$0xff]
  %v648 = vld [vmem:[#allocation2 + $0x498] sm:$0xff]
  %v649 = vld [vmem:[#allocation2 + $0x4a0] sm:$0xff]
  %v650 = vld [vmem:[#allocation2 + $0x4a8] sm:$0xff]
  %v651 = vld [vmem:[#allocation2 + $0x4b0] sm:$0xff]
  %v652 = vld [vmem:[#allocation2 + $0x4b8] sm:$0xff]
  %v653 = vld [vmem:[#allocation2 + $0x4c0] sm:$0xff]
  %v654 = vld [vmem:[#allocation2 + $0x4c8] sm:$0xff]
  %v655 = vld [vmem:[#allocation2 + $0x4d0] sm:$0xff]
  %v656 = vld [vmem:[#allocation2 + $0x4d8] sm:$0xff]
  %v657 = vld [vmem:[#allocation2 + $0x4e0] sm:$0xff]
  %v658 = vld [vmem:[#allocation2 + $0x4e8] sm:$0xff]
  %v659 = vld [vmem:[#allocation2 + $0x4f0] sm:$0xff]
  %v660 = vld [vmem:[#allocation2 + $0x4f8] sm:$0xff]
  %v661 = vld [vmem:[#allocation2 + $0x500] sm:$0xff]
  %v662 = vld [vmem:[#allocation2 + $0x508] sm:$0xff]
  %v663 = vld [vmem:[#allocation2 + $0x510] sm:$0xff]
  %v664 = vld [vmem:[#allocation2 + $0x518] sm:$0xff]
  %v665 = vld [vmem:[#allocation2 + $0x520] sm:$0xff]
  %v666 = vld [vmem:[#allocation2 + $0x528] sm:$0xff]
  %v667 = vld [vmem:[#allocation2 + $0x530] sm:$0xff]
  %v668 = vld [vmem:[#allocation2 + $0x538] sm:$0xff]
  %v669 = vld [vmem:[#allocation2 + $0x540] sm:$0xff]
  %v670 = vld [vmem:[#allocation2 + $0x548] sm:$0xff]
  %v671 = vld [vmem:[#allocation2 + $0x550] sm:$0xff]
  %v672 = vld [vmem:[#allocation2 + $0x558] sm:$0xff]
  %v673 = vld [vmem:[#allocation2 + $0x560] sm:$0xff]
  %v674 = vld [vmem:[#allocation2 + $0x568] sm:$0xff]
  %v675 = vld [vmem:[#allocation2 + $0x570] sm:$0xff]
  %v676 = vld [vmem:[#allocation2 + $0x578] sm:$0xff]
  %v677 = vld [vmem:[#allocation2 + $0x580] sm:$0xff]
  %v678 = vld [vmem:[#allocation2 + $0x588] sm:$0xff]
  %v679 = vld [vmem:[#allocation2 + $0x590] sm:$0xff]
  %v680 = vld [vmem:[#allocation2 + $0x598] sm:$0xff]
  %v681 = vld [vmem:[#allocation2 + $0x5a0] sm:$0xff]
  %v682 = vld [vmem:[#allocation2 + $0x5a8] sm:$0xff]
  %v683 = vld [vmem:[#allocation2 + $0x5b0] sm:$0xff]
  %v684 = vld [vmem:[#allocation2 + $0x5b8] sm:$0xff]
  %v685 = vld [vmem:[#allocation2 + $0x5c0] sm:$0xff]
  %v686 = vld [vmem:[#allocation2 + $0x5c8] sm:$0xff]
  %v687 = vld [vmem:[#allocation2 + $0x5d0] sm:$0xff]
  %v688 = vld [vmem:[#allocation2 + $0x5d8] sm:$0xff]
  %v689 = vld [vmem:[#allocation2 + $0x5e0] sm:$0xff]
  %v690 = vld [vmem:[#allocation2 + $0x5e8] sm:$0xff]
  %v691 = vld [vmem:[#allocation2 + $0x5f0] sm:$0xff]
  %v692 = vld [vmem:[#allocation2 + $0x5f8] sm:$0xff]
  %v693 = vld [vmem:[#allocation2 + $0x600] sm:$0xff]
  %v694 = vld [vmem:[#allocation2 + $0x608] sm:$0xff]
  %v695 = vld [vmem:[#allocation2 + $0x610] sm:$0xff]
  %v696 = vld [vmem:[#allocation2 + $0x618] sm:$0xff]
  %v697 = vld [vmem:[#allocation2 + $0x620] sm:$0xff]
  %v698 = vld [vmem:[#allocation2 + $0x628] sm:$0xff]
  %v699 = vld [vmem:[#allocation2 + $0x630] sm:$0xff]
  %v700 = vld [vmem:[#allocation2 + $0x638] sm:$0xff]
  %v701 = vld [vmem:[#allocation2 + $0x640] sm:$0xff]
  %v702 = vld [vmem:[#allocation2 + $0x648] sm:$0xff]
  %v703 = vld [vmem:[#allocation2 + $0x650] sm:$0xff]
  %v704 = vld [vmem:[#allocation2 + $0x658] sm:$0xff]
  %v705 = vld [vmem:[#allocation2 + $0x660] sm:$0xff]
  %v706 = vld [vmem:[#allocation2 + $0x668] sm:$0xff]
  %v707 = vld [vmem:[#allocation2 + $0x670] sm:$0xff]
  %v708 = vld [vmem:[#allocation2 + $0x678] sm:$0xff]
  %v709 = vld [vmem:[#allocation2 + $0x680] sm:$0xff]
  %v710 = vld [vmem:[#allocation2 + $0x688] sm:$0xff]
  %v711 = vld [vmem:[#allocation2 + $0x690] sm:$0xff]
  %v712 = vld [vmem:[#allocation2 + $0x698] sm:$0xff]
  %v713 = vld [vmem:[#allocation2 + $0x6a0] sm:$0xff]
  %v714 = vld [vmem:[#allocation2 + $0x6a8] sm:$0xff]
  %v715 = vld [vmem:[#allocation2 + $0x6b0] sm:$0xff]
  %v716 = vld [vmem:[#allocation2 + $0x6b8] sm:$0xff]
  %v717 = vld [vmem:[#allocation2 + $0x6c0] sm:$0xff]
  %v718 = vld [vmem:[#allocation2 + $0x6c8] sm:$0xff]
  %v719 = vld [vmem:[#allocation2 + $0x6d0] sm:$0xff]
  %v720 = vld [vmem:[#allocation2 + $0x6d8] sm:$0xff]
  %v721 = vld [vmem:[#allocation2 + $0x6e0] sm:$0xff]
  %v722 = vld [vmem:[#allocation2 + $0x6e8] sm:$0xff]
  %v723 = vld [vmem:[#allocation2 + $0x6f0] sm:$0xff]
  %v724 = vld [vmem:[#allocation2 + $0x6f8] sm:$0xff]
  %725 = vmatpush.msra.mxu0 %v606
  %726 = vmatpush.msra.mxu0 %v599
  %727 = vmatpush.msra.mxu0 %v592
  %728 = vmatpush.msra.mxu0 %v585
  %729 = vmatpush.msra.mxu0 %v578
  %730 = vmatpush.msra.mxu0 %v571
  %731 = vmatpush.msra.mxu0 %v564
  %732 = vmatpush.msra.mxu0 %v557
  %733 = vmatpush.msra.mxu0 %v550
  %734 = vmatpush.msra.mxu0 %v543
  %735 = vmatpush.msra.mxu0 %v536
  %736 = vmatpush.msra.mxu0 %v529
  %737 = vmatpush.msra.mxu0 %v522
  %738 = vmatpush.msra.mxu0 %v515
  %739 = vmatpush.msra.mxu0 %v508
  %740 = vmatpush.msra.mxu0 %v501
  %741 = vmatmul.f32.gmra.mxu0 %v469
  %v742 = vpop.f32.mrf.mxu0
  %v743 = vadd.f32 0.0, %v742
  %744 = vmatmul.f32.gmra.mxu0 %v471
  %v745 = vpop.f32.mrf.mxu0
  %v746 = vadd.f32 0.0, %v745
  %747 = vmatmul.f32.gmra.mxu0 %v473
  %v748 = vpop.f32.mrf.mxu0
  %v749 = vadd.f32 0.0, %v748
  %750 = vmatmul.f32.gmra.mxu0 %v475
  %v751 = vpop.f32.mrf.mxu0
  %v752 = vadd.f32 0.0, %v751
  %753 = vmatmul.f32.gmra.mxu0 %v477
  %v754 = vpop.f32.mrf.mxu0
  %v755 = vadd.f32 0.0, %v754
  %756 = vmatmul.f32.gmra.mxu0 %v479
  %v757 = vpop.f32.mrf.mxu0
  %v758 = vadd.f32 0.0, %v757
  %759 = vmatmul.f32.gmra.mxu0 %v481
  %v760 = vpop.f32.mrf.mxu0
  %v761 = vadd.f32 0.0, %v760
  %762 = vmatmul.f32.gmra.mxu0 %v483
  %v763 = vpop.f32.mrf.mxu0
  %v764 = vadd.f32 0.0, %v763
  %765 = vmatmul.f32.gmra.mxu0 %v485
  %v766 = vpop.f32.mrf.mxu0
  %v767 = vadd.f32 0.0, %v766
  %768 = vmatmul.f32.gmra.mxu0 %v487
  %v769 = vpop.f32.mrf.mxu0
  %v770 = vadd.f32 0.0, %v769
  %771 = vmatmul.f32.gmra.mxu0 %v489
  %v772 = vpop.f32.mrf.mxu0
  %v773 = vadd.f32 0.0, %v772
  %774 = vmatmul.f32.gmra.mxu0 %v491
  %v775 = vpop.f32.mrf.mxu0
  %v776 = vadd.f32 0.0, %v775
  %777 = vmatmul.f32.gmra.mxu0 %v493
  %v778 = vpop.f32.mrf.mxu0
  %v779 = vadd.f32 0.0, %v778
  %780 = vmatmul.f32.gmra.mxu0 %v495
  %v781 = vpop.f32.mrf.mxu0
  %v782 = vadd.f32 0.0, %v781
  %783 = vmatmul.f32.gmra.mxu0 %v497
  %v784 = vpop.f32.mrf.mxu0
  %v785 = vadd.f32 0.0, %v784
  %786 = vmatmul.f32.gmra.mxu0 %v499
  %v787 = vpop.f32.mrf.mxu0
  %v788 = vadd.f32 0.0, %v787
  %789 = vdwg.mxu0
  %790 = vmatpush.msra.mxu0 %v718
  %791 = vmatpush.msra.mxu0 %v711
  %792 = vmatpush.msra.mxu0 %v704
  %793 = vmatpush.msra.mxu0 %v697
  %794 = vmatpush.msra.mxu0 %v690
  %795 = vmatpush.msra.mxu0 %v683
  %796 = vmatpush.msra.mxu0 %v676
  %797 = vmatpush.msra.mxu0 %v669
  %798 = vmatpush.msra.mxu0 %v662
  %799 = vmatpush.msra.mxu0 %v655
  %800 = vmatpush.msra.mxu0 %v648
  %801 = vmatpush.msra.mxu0 %v641
  %802 = vmatpush.msra.mxu0 %v634
  %803 = vmatpush.msra.mxu0 %v627
  %804 = vmatpush.msra.mxu0 %v620
  %805 = vmatpush.msra.mxu0 %v613
  %806 = vmatmul.f32.gmra.mxu0 %v470
  %v807 = vpop.f32.mrf.mxu0
  %v808 = vadd.f32 %v743, %v807
  %809 = vmatmul.f32.gmra.mxu0 %v472
  %v810 = vpop.f32.mrf.mxu0
  %v811 = vadd.f32 %v746, %v810
  %812 = vmatmul.f32.gmra.mxu0 %v474
  %v813 = vpop.f32.mrf.mxu0
  %v814 = vadd.f32 %v749, %v813
  %815 = vmatmul.f32.gmra.mxu0 %v476
  %v816 = vpop.f32.mrf.mxu0
  %v817 = vadd.f32 %v752, %v816
  %818 = vmatmul.f32.gmra.mxu0 %v478
  %v819 = vpop.f32.mrf.mxu0
  %v820 = vadd.f32 %v755, %v819
  %821 = vmatmul.f32.gmra.mxu0 %v480
  %v822 = vpop.f32.mrf.mxu0
  %v823 = vadd.f32 %v758, %v822
  %824 = vmatmul.f32.gmra.mxu0 %v482
  %v825 = vpop.f32.mrf.mxu0
  %v826 = vadd.f32 %v761, %v825
  %827 = vmatmul.f32.gmra.mxu0 %v484
  %v828 = vpop.f32.mrf.mxu0
  %v829 = vadd.f32 %v764, %v828
  %830 = vmatmul.f32.gmra.mxu0 %v486
  %v831 = vpop.f32.mrf.mxu0
  %v832 = vadd.f32 %v767, %v831
  %833 = vmatmul.f32.gmra.mxu0 %v488
  %v834 = vpop.f32.mrf.mxu0
  %v835 = vadd.f32 %v770, %v834
  %836 = vmatmul.f32.gmra.mxu0 %v490
  %v837 = vpop.f32.mrf.mxu0
  %v838 = vadd.f32 %v773, %v837
  %839 = vmatmul.f32.gmra.mxu0 %v492
  %v840 = vpop.f32.mrf.mxu0
  %v841 = vadd.f32 %v776, %v840
  %842 = vmatmul.f32.gmra.mxu0 %v494
  %v843 = vpop.f32.mrf.mxu0
  %v844 = vadd.f32 %v779, %v843
  %845 = vmatmul.f32.gmra.mxu0 %v496
  %v846 = vpop.f32.mrf.mxu0
  %v847 = vadd.f32 %v782, %v846
  %848 = vmatmul.f32.gmra.mxu0 %v498
  %v849 = vpop.f32.mrf.mxu0
  %v850 = vadd.f32 %v785, %v849
  %851 = vmatmul.f32.gmra.mxu0 %v500
  %v852 = vpop.f32.mrf.mxu0
  %v853 = vadd.f32 %v788, %v852
  %854 = vdwg.mxu0
  %855 = vmatpush.msra.mxu0 %v607
  %856 = vmatpush.msra.mxu0 %v600
  %857 = vmatpush.msra.mxu0 %v593
  %858 = vmatpush.msra.mxu0 %v586
  %859 = vmatpush.msra.mxu0 %v579
  %860 = vmatpush.msra.mxu0 %v572
  %861 = vmatpush.msra.mxu0 %v565
  %862 = vmatpush.msra.mxu0 %v558
  %863 = vmatpush.msra.mxu0 %v551
  %864 = vmatpush.msra.mxu0 %v544
  %865 = vmatpush.msra.mxu0 %v537
  %866 = vmatpush.msra.mxu0 %v530
  %867 = vmatpush.msra.mxu0 %v523
  %868 = vmatpush.msra.mxu0 %v516
  %869 = vmatpush.msra.mxu0 %v509
  %870 = vmatpush.msra.mxu0 %v502
  %871 = vmatmul.f32.gmra.mxu0 %v469
  %v872 = vpop.f32.mrf.mxu0
  %v873 = vadd.f32 0.0, %v872
  %874 = vmatmul.f32.gmra.mxu0 %v471
  %v875 = vpop.f32.mrf.mxu0
  %v876 = vadd.f32 0.0, %v875
  %877 = vmatmul.f32.gmra.mxu0 %v473
  %v878 = vpop.f32.mrf.mxu0
  %v879 = vadd.f32 0.0, %v878
  %880 = vmatmul.f32.gmra.mxu0 %v475
  %v881 = vpop.f32.mrf.mxu0
  %v882 = vadd.f32 0.0, %v881
  %883 = vmatmul.f32.gmra.mxu0 %v477
  %v884 = vpop.f32.mrf.mxu0
  %v885 = vadd.f32 0.0, %v884
  %886 = vmatmul.f32.gmra.mxu0 %v479
  %v887 = vpop.f32.mrf.mxu0
  %v888 = vadd.f32 0.0, %v887
  %889 = vmatmul.f32.gmra.mxu0 %v481
  %v890 = vpop.f32.mrf.mxu0
  %v891 = vadd.f32 0.0, %v890
  %892 = vmatmul.f32.gmra.mxu0 %v483
  %v893 = vpop.f32.mrf.mxu0
  %v894 = vadd.f32 0.0, %v893
  %895 = vmatmul.f32.gmra.mxu0 %v485
  %v896 = vpop.f32.mrf.mxu0
  %v897 = vadd.f32 0.0, %v896
  %898 = vmatmul.f32.gmra.mxu0 %v487
  %v899 = vpop.f32.mrf.mxu0
  %v900 = vadd.f32 0.0, %v899
  %901 = vmatmul.f32.gmra.mxu0 %v489
  %v902 = vpop.f32.mrf.mxu0
  %v903 = vadd.f32 0.0, %v902
  %904 = vmatmul.f32.gmra.mxu0 %v491
  %v905 = vpop.f32.mrf.mxu0
  %v906 = vadd.f32 0.0, %v905
  %907 = vmatmul.f32.gmra.mxu0 %v493
  %v908 = vpop.f32.mrf.mxu0
  %v909 = vadd.f32 0.0, %v908
  %910 = vmatmul.f32.gmra.mxu0 %v495
  %v911 = vpop.f32.mrf.mxu0
  %v912 = vadd.f32 0.0, %v911
  %913 = vmatmul.f32.gmra.mxu0 %v497
  %v914 = vpop.f32.mrf.mxu0
  %v915 = vadd.f32 0.0, %v914
  %916 = vmatmul.f32.gmra.mxu0 %v499
  %v917 = vpop.f32.mrf.mxu0
  %v918 = vadd.f32 0.0, %v917
  %919 = vdwg.mxu0
  %920 = vmatpush.msra.mxu0 %v719
  %921 = vmatpush.msra.mxu0 %v712
  %922 = vmatpush.msra.mxu0 %v705
  %923 = vmatpush.msra.mxu0 %v698
  %924 = vmatpush.msra.mxu0 %v691
  %925 = vmatpush.msra.mxu0 %v684
  %926 = vmatpush.msra.mxu0 %v677
  %927 = vmatpush.msra.mxu0 %v670
  %928 = vmatpush.msra.mxu0 %v663
  %929 = vmatpush.msra.mxu0 %v656
  %930 = vmatpush.msra.mxu0 %v649
  %931 = vmatpush.msra.mxu0 %v642
  %932 = vmatpush.msra.mxu0 %v635
  %933 = vmatpush.msra.mxu0 %v628
  %934 = vmatpush.msra.mxu0 %v621
  %935 = vmatpush.msra.mxu0 %v614
  %936 = vmatmul.f32.gmra.mxu0 %v470
  %v937 = vpop.f32.mrf.mxu0
  %v938 = vadd.f32 %v873, %v937
  %939 = vmatmul.f32.gmra.mxu0 %v472
  %v940 = vpop.f32.mrf.mxu0
  %v941 = vadd.f32 %v876, %v940
  %942 = vmatmul.f32.gmra.mxu0 %v474
  %v943 = vpop.f32.mrf.mxu0
  %v944 = vadd.f32 %v879, %v943
  %945 = vmatmul.f32.gmra.mxu0 %v476
  %v946 = vpop.f32.mrf.mxu0
  %v947 = vadd.f32 %v882, %v946
  %948 = vmatmul.f32.gmra.mxu0 %v478
  %v949 = vpop.f32.mrf.mxu0
  %v950 = vadd.f32 %v885, %v949
  %951 = vmatmul.f32.gmra.mxu0 %v480
  %v952 = vpop.f32.mrf.mxu0
  %v953 = vadd.f32 %v888, %v952
  %954 = vmatmul.f32.gmra.mxu0 %v482
  %v955 = vpop.f32.mrf.mxu0
  %v956 = vadd.f32 %v891, %v955
  %957 = vmatmul.f32.gmra.mxu0 %v484
  %v958 = vpop.f32.mrf.mxu0
  %v959 = vadd.f32 %v894, %v958
  %960 = vmatmul.f32.gmra.mxu0 %v486
  %v961 = vpop.f32.mrf.mxu0
  %v962 = vadd.f32 %v897, %v961
  %963 = vmatmul.f32.gmra.mxu0 %v488
  %v964 = vpop.f32.mrf.mxu0
  %v965 = vadd.f32 %v900, %v964
  %966 = vmatmul.f32.gmra.mxu0 %v490
  %v967 = vpop.f32.mrf.mxu0
  %v968 = vadd.f32 %v903, %v967
  %969 = vmatmul.f32.gmra.mxu0 %v492
  %v970 = vpop.f32.mrf.mxu0
  %v971 = vadd.f32 %v906, %v970
  %972 = vmatmul.f32.gmra.mxu0 %v494
  %v973 = vpop.f32.mrf.mxu0
  %v974 = vadd.f32 %v909, %v973
  %975 = vmatmul.f32.gmra.mxu0 %v496
  %v976 = vpop.f32.mrf.mxu0
  %v977 = vadd.f32 %v912, %v976
  %978 = vmatmul.f32.gmra.mxu0 %v498
  %v979 = vpop.f32.mrf.mxu0
  %v980 = vadd.f32 %v915, %v979
  %981 = vmatmul.f32.gmra.mxu0 %v500
  %v982 = vpop.f32.mrf.mxu0
  %v983 = vadd.f32 %v918, %v982
  %984 = vdwg.mxu0
  %985 = vmatpush.msra.mxu0 %v608
  %986 = vmatpush.msra.mxu0 %v601
  %987 = vmatpush.msra.mxu0 %v594
  %988 = vmatpush.msra.mxu0 %v587
  %989 = vmatpush.msra.mxu0 %v580
  %990 = vmatpush.msra.mxu0 %v573
  %991 = vmatpush.msra.mxu0 %v566
  %992 = vmatpush.msra.mxu0 %v559
  %993 = vmatpush.msra.mxu0 %v552
  %994 = vmatpush.msra.mxu0 %v545
  %995 = vmatpush.msra.mxu0 %v538
  %996 = vmatpush.msra.mxu0 %v531
  %997 = vmatpush.msra.mxu0 %v524
  %998 = vmatpush.msra.mxu0 %v517
  %999 = vmatpush.msra.mxu0 %v510
  %1000 = vmatpush.msra.mxu0 %v503
  %1001 = vmatmul.f32.gmra.mxu0 %v469
  %v1002 = vpop.f32.mrf.mxu0
  %v1003 = vadd.f32 0.0, %v1002
  %1004 = vmatmul.f32.gmra.mxu0 %v471
  %v1005 = vpop.f32.mrf.mxu0
  %v1006 = vadd.f32 0.0, %v1005
  %1007 = vmatmul.f32.gmra.mxu0 %v473
  %v1008 = vpop.f32.mrf.mxu0
  %v1009 = vadd.f32 0.0, %v1008
  %1010 = vmatmul.f32.gmra.mxu0 %v475
  %v1011 = vpop.f32.mrf.mxu0
  %v1012 = vadd.f32 0.0, %v1011
  %1013 = vmatmul.f32.gmra.mxu0 %v477
  %v1014 = vpop.f32.mrf.mxu0
  %v1015 = vadd.f32 0.0, %v1014
  %1016 = vmatmul.f32.gmra.mxu0 %v479
  %v1017 = vpop.f32.mrf.mxu0
  %v1018 = vadd.f32 0.0, %v1017
  %1019 = vmatmul.f32.gmra.mxu0 %v481
  %v1020 = vpop.f32.mrf.mxu0
  %v1021 = vadd.f32 0.0, %v1020
  %1022 = vmatmul.f32.gmra.mxu0 %v483
  %v1023 = vpop.f32.mrf.mxu0
  %v1024 = vadd.f32 0.0, %v1023
  %1025 = vmatmul.f32.gmra.mxu0 %v485
  %v1026 = vpop.f32.mrf.mxu0
  %v1027 = vadd.f32 0.0, %v1026
  %1028 = vmatmul.f32.gmra.mxu0 %v487
  %v1029 = vpop.f32.mrf.mxu0
  %v1030 = vadd.f32 0.0, %v1029
  %1031 = vmatmul.f32.gmra.mxu0 %v489
  %v1032 = vpop.f32.mrf.mxu0
  %v1033 = vadd.f32 0.0, %v1032
  %1034 = vmatmul.f32.gmra.mxu0 %v491
  %v1035 = vpop.f32.mrf.mxu0
  %v1036 = vadd.f32 0.0, %v1035
  %1037 = vmatmul.f32.gmra.mxu0 %v493
  %v1038 = vpop.f32.mrf.mxu0
  %v1039 = vadd.f32 0.0, %v1038
  %1040 = vmatmul.f32.gmra.mxu0 %v495
  %v1041 = vpop.f32.mrf.mxu0
  %v1042 = vadd.f32 0.0, %v1041
  %1043 = vmatmul.f32.gmra.mxu0 %v497
  %v1044 = vpop.f32.mrf.mxu0
  %v1045 = vadd.f32 0.0, %v1044
  %1046 = vmatmul.f32.gmra.mxu0 %v499
  %v1047 = vpop.f32.mrf.mxu0
  %v1048 = vadd.f32 0.0, %v1047
  %1049 = vdwg.mxu0
  %1050 = vmatpush.msra.mxu0 %v720
  %1051 = vmatpush.msra.mxu0 %v713
  %1052 = vmatpush.msra.mxu0 %v706
  %1053 = vmatpush.msra.mxu0 %v699
  %1054 = vmatpush.msra.mxu0 %v692
  %1055 = vmatpush.msra.mxu0 %v685
  %1056 = vmatpush.msra.mxu0 %v678
  %1057 = vmatpush.msra.mxu0 %v671
  %1058 = vmatpush.msra.mxu0 %v664
  %1059 = vmatpush.msra.mxu0 %v657
  %1060 = vmatpush.msra.mxu0 %v650
  %1061 = vmatpush.msra.mxu0 %v643
  %1062 = vmatpush.msra.mxu0 %v636
  %1063 = vmatpush.msra.mxu0 %v629
  %1064 = vmatpush.msra.mxu0 %v622
  %1065 = vmatpush.msra.mxu0 %v615
  %1066 = vmatmul.f32.gmra.mxu0 %v470
  %v1067 = vpop.f32.mrf.mxu0
  %v1068 = vadd.f32 %v1003, %v1067
  %1069 = vmatmul.f32.gmra.mxu0 %v472
  %v1070 = vpop.f32.mrf.mxu0
  %v1071 = vadd.f32 %v1006, %v1070
  %1072 = vmatmul.f32.gmra.mxu0 %v474
  %v1073 = vpop.f32.mrf.mxu0
  %v1074 = vadd.f32 %v1009, %v1073
  %1075 = vmatmul.f32.gmra.mxu0 %v476
  %v1076 = vpop.f32.mrf.mxu0
  %v1077 = vadd.f32 %v1012, %v1076
  %1078 = vmatmul.f32.gmra.mxu0 %v478
  %v1079 = vpop.f32.mrf.mxu0
  %v1080 = vadd.f32 %v1015, %v1079
  %1081 = vmatmul.f32.gmra.mxu0 %v480
  %v1082 = vpop.f32.mrf.mxu0
  %v1083 = vadd.f32 %v1018, %v1082
  %1084 = vmatmul.f32.gmra.mxu0 %v482
  %v1085 = vpop.f32.mrf.mxu0
  %v1086 = vadd.f32 %v1021, %v1085
  %1087 = vmatmul.f32.gmra.mxu0 %v484
  %v1088 = vpop.f32.mrf.mxu0
  %v1089 = vadd.f32 %v1024, %v1088
  %1090 = vmatmul.f32.gmra.mxu0 %v486
  %v1091 = vpop.f32.mrf.mxu0
  %v1092 = vadd.f32 %v1027, %v1091
  %1093 = vmatmul.f32.gmra.mxu0 %v488
  %v1094 = vpop.f32.mrf.mxu0
  %v1095 = vadd.f32 %v1030, %v1094
  %1096 = vmatmul.f32.gmra.mxu0 %v490
  %v1097 = vpop.f32.mrf.mxu0
  %v1098 = vadd.f32 %v1033, %v1097
  %1099 = vmatmul.f32.gmra.mxu0 %v492
  %v1100 = vpop.f32.mrf.mxu0
  %v1101 = vadd.f32 %v1036, %v1100
  %1102 = vmatmul.f32.gmra.mxu0 %v494
  %v1103 = vpop.f32.mrf.mxu0
  %v1104 = vadd.f32 %v1039, %v1103
  %1105 = vmatmul.f32.gmra.mxu0 %v496
  %v1106 = vpop.f32.mrf.mxu0
  %v1107 = vadd.f32 %v1042, %v1106
  %1108 = vmatmul.f32.gmra.mxu0 %v498
  %v1109 = vpop.f32.mrf.mxu0
  %v1110 = vadd.f32 %v1045, %v1109
  %1111 = vmatmul.f32.gmra.mxu0 %v500
  %v1112 = vpop.f32.mrf.mxu0
  %v1113 = vadd.f32 %v1048, %v1112
  %1114 = vdwg.mxu0
  %1115 = vmatpush.msra.mxu0 %v609
  %1116 = vmatpush.msra.mxu0 %v602
  %1117 = vmatpush.msra.mxu0 %v595
  %1118 = vmatpush.msra.mxu0 %v588
  %1119 = vmatpush.msra.mxu0 %v581
  %1120 = vmatpush.msra.mxu0 %v574
  %1121 = vmatpush.msra.mxu0 %v567
  %1122 = vmatpush.msra.mxu0 %v560
  %1123 = vmatpush.msra.mxu0 %v553
  %1124 = vmatpush.msra.mxu0 %v546
  %1125 = vmatpush.msra.mxu0 %v539
  %1126 = vmatpush.msra.mxu0 %v532
  %1127 = vmatpush.msra.mxu0 %v525
  %1128 = vmatpush.msra.mxu0 %v518
  %1129 = vmatpush.msra.mxu0 %v511
  %1130 = vmatpush.msra.mxu0 %v504
  %1131 = vmatmul.f32.gmra.mxu0 %v469
  %v1132 = vpop.f32.mrf.mxu0
  %v1133 = vadd.f32 0.0, %v1132
  %1134 = vmatmul.f32.gmra.mxu0 %v471
  %v1135 = vpop.f32.mrf.mxu0
  %v1136 = vadd.f32 0.0, %v1135
  %1137 = vmatmul.f32.gmra.mxu0 %v473
  %v1138 = vpop.f32.mrf.mxu0
  %v1139 = vadd.f32 0.0, %v1138
  %1140 = vmatmul.f32.gmra.mxu0 %v475
  %v1141 = vpop.f32.mrf.mxu0
  %v1142 = vadd.f32 0.0, %v1141
  %1143 = vmatmul.f32.gmra.mxu0 %v477
  %v1144 = vpop.f32.mrf.mxu0
  %v1145 = vadd.f32 0.0, %v1144
  %1146 = vmatmul.f32.gmra.mxu0 %v479
  %v1147 = vpop.f32.mrf.mxu0
  %v1148 = vadd.f32 0.0, %v1147
  %1149 = vmatmul.f32.gmra.mxu0 %v481
  %v1150 = vpop.f32.mrf.mxu0
  %v1151 = vadd.f32 0.0, %v1150
  %1152 = vmatmul.f32.gmra.mxu0 %v483
  %v1153 = vpop.f32.mrf.mxu0
  %v1154 = vadd.f32 0.0, %v1153
  %1155 = vmatmul.f32.gmra.mxu0 %v485
  %v1156 = vpop.f32.mrf.mxu0
  %v1157 = vadd.f32 0.0, %v1156
  %1158 = vmatmul.f32.gmra.mxu0 %v487
  %v1159 = vpop.f32.mrf.mxu0
  %v1160 = vadd.f32 0.0, %v1159
  %1161 = vmatmul.f32.gmra.mxu0 %v489
  %v1162 = vpop.f32.mrf.mxu0
  %v1163 = vadd.f32 0.0, %v1162
  %1164 = vmatmul.f32.gmra.mxu0 %v491
  %v1165 = vpop.f32.mrf.mxu0
  %v1166 = vadd.f32 0.0, %v1165
  %1167 = vmatmul.f32.gmra.mxu0 %v493
  %v1168 = vpop.f32.mrf.mxu0
  %v1169 = vadd.f32 0.0, %v1168
  %1170 = vmatmul.f32.gmra.mxu0 %v495
  %v1171 = vpop.f32.mrf.mxu0
  %v1172 = vadd.f32 0.0, %v1171
  %1173 = vmatmul.f32.gmra.mxu0 %v497
  %v1174 = vpop.f32.mrf.mxu0
  %v1175 = vadd.f32 0.0, %v1174
  %1176 = vmatmul.f32.gmra.mxu0 %v499
  %v1177 = vpop.f32.mrf.mxu0
  %v1178 = vadd.f32 0.0, %v1177
  %1179 = vdwg.mxu0
  %1180 = vmatpush.msra.mxu0 %v721
  %1181 = vmatpush.msra.mxu0 %v714
  %1182 = vmatpush.msra.mxu0 %v707
  %1183 = vmatpush.msra.mxu0 %v700
  %1184 = vmatpush.msra.mxu0 %v693
  %1185 = vmatpush.msra.mxu0 %v686
  %1186 = vmatpush.msra.mxu0 %v679
  %1187 = vmatpush.msra.mxu0 %v672
  %1188 = vmatpush.msra.mxu0 %v665
  %1189 = vmatpush.msra.mxu0 %v658
  %1190 = vmatpush.msra.mxu0 %v651
  %1191 = vmatpush.msra.mxu0 %v644
  %1192 = vmatpush.msra.mxu0 %v637
  %1193 = vmatpush.msra.mxu0 %v630
  %1194 = vmatpush.msra.mxu0 %v623
  %1195 = vmatpush.msra.mxu0 %v616
  %1196 = vmatmul.f32.gmra.mxu0 %v470
  %v1197 = vpop.f32.mrf.mxu0
  %v1198 = vadd.f32 %v1133, %v1197
  %1199 = vmatmul.f32.gmra.mxu0 %v472
  %v1200 = vpop.f32.mrf.mxu0
  %v1201 = vadd.f32 %v1136, %v1200
  %1202 = vmatmul.f32.gmra.mxu0 %v474
  %v1203 = vpop.f32.mrf.mxu0
  %v1204 = vadd.f32 %v1139, %v1203
  %1205 = vmatmul.f32.gmra.mxu0 %v476
  %v1206 = vpop.f32.mrf.mxu0
  %v1207 = vadd.f32 %v1142, %v1206
  %1208 = vmatmul.f32.gmra.mxu0 %v478
  %v1209 = vpop.f32.mrf.mxu0
  %v1210 = vadd.f32 %v1145, %v1209
  %1211 = vmatmul.f32.gmra.mxu0 %v480
  %v1212 = vpop.f32.mrf.mxu0
  %v1213 = vadd.f32 %v1148, %v1212
  %1214 = vmatmul.f32.gmra.mxu0 %v482
  %v1215 = vpop.f32.mrf.mxu0
  %v1216 = vadd.f32 %v1151, %v1215
  %1217 = vmatmul.f32.gmra.mxu0 %v484
  %v1218 = vpop.f32.mrf.mxu0
  %v1219 = vadd.f32 %v1154, %v1218
  %1220 = vmatmul.f32.gmra.mxu0 %v486
  %v1221 = vpop.f32.mrf.mxu0
  %v1222 = vadd.f32 %v1157, %v1221
  %1223 = vmatmul.f32.gmra.mxu0 %v488
  %v1224 = vpop.f32.mrf.mxu0
  %v1225 = vadd.f32 %v1160, %v1224
  %1226 = vmatmul.f32.gmra.mxu0 %v490
  %v1227 = vpop.f32.mrf.mxu0
  %v1228 = vadd.f32 %v1163, %v1227
  %1229 = vmatmul.f32.gmra.mxu0 %v492
  %v1230 = vpop.f32.mrf.mxu0
  %v1231 = vadd.f32 %v1166, %v1230
  %1232 = vmatmul.f32.gmra.mxu0 %v494
  %v1233 = vpop.f32.mrf.mxu0
  %v1234 = vadd.f32 %v1169, %v1233
  %1235 = vmatmul.f32.gmra.mxu0 %v496
  %v1236 = vpop.f32.mrf.mxu0
  %v1237 = vadd.f32 %v1172, %v1236
  %1238 = vmatmul.f32.gmra.mxu0 %v498
  %v1239 = vpop.f32.mrf.mxu0
  %v1240 = vadd.f32 %v1175, %v1239
  %1241 = vmatmul.f32.gmra.mxu0 %v500
  %v1242 = vpop.f32.mrf.mxu0
  %v1243 = vadd.f32 %v1178, %v1242
  %1244 = vdwg.mxu0
  %1245 = vmatpush.msra.mxu0 %v610
  %1246 = vmatpush.msra.mxu0 %v603
  %1247 = vmatpush.msra.mxu0 %v596
  %1248 = vmatpush.msra.mxu0 %v589
  %1249 = vmatpush.msra.mxu0 %v582
  %1250 = vmatpush.msra.mxu0 %v575
  %1251 = vmatpush.msra.mxu0 %v568
  %1252 = vmatpush.msra.mxu0 %v561
  %1253 = vmatpush.msra.mxu0 %v554
  %1254 = vmatpush.msra.mxu0 %v547
  %1255 = vmatpush.msra.mxu0 %v540
  %1256 = vmatpush.msra.mxu0 %v533
  %1257 = vmatpush.msra.mxu0 %v526
  %1258 = vmatpush.msra.mxu0 %v519
  %1259 = vmatpush.msra.mxu0 %v512
  %1260 = vmatpush.msra.mxu0 %v505
  %1261 = vmatmul.f32.gmra.mxu0 %v469
  %v1262 = vpop.f32.mrf.mxu0
  %v1263 = vadd.f32 0.0, %v1262
  %1264 = vmatmul.f32.gmra.mxu0 %v471
  %v1265 = vpop.f32.mrf.mxu0
  %v1266 = vadd.f32 0.0, %v1265
  %1267 = vmatmul.f32.gmra.mxu0 %v473
  %v1268 = vpop.f32.mrf.mxu0
  %v1269 = vadd.f32 0.0, %v1268
  %1270 = vmatmul.f32.gmra.mxu0 %v475
  %v1271 = vpop.f32.mrf.mxu0
  %v1272 = vadd.f32 0.0, %v1271
  %1273 = vmatmul.f32.gmra.mxu0 %v477
  %v1274 = vpop.f32.mrf.mxu0
  %v1275 = vadd.f32 0.0, %v1274
  %1276 = vmatmul.f32.gmra.mxu0 %v479
  %v1277 = vpop.f32.mrf.mxu0
  %v1278 = vadd.f32 0.0, %v1277
  %1279 = vmatmul.f32.gmra.mxu0 %v481
  %v1280 = vpop.f32.mrf.mxu0
  %v1281 = vadd.f32 0.0, %v1280
  %1282 = vmatmul.f32.gmra.mxu0 %v483
  %v1283 = vpop.f32.mrf.mxu0
  %v1284 = vadd.f32 0.0, %v1283
  %1285 = vmatmul.f32.gmra.mxu0 %v485
  %v1286 = vpop.f32.mrf.mxu0
  %v1287 = vadd.f32 0.0, %v1286
  %1288 = vmatmul.f32.gmra.mxu0 %v487
  %v1289 = vpop.f32.mrf.mxu0
  %v1290 = vadd.f32 0.0, %v1289
  %1291 = vmatmul.f32.gmra.mxu0 %v489
  %v1292 = vpop.f32.mrf.mxu0
  %v1293 = vadd.f32 0.0, %v1292
  %1294 = vmatmul.f32.gmra.mxu0 %v491
  %v1295 = vpop.f32.mrf.mxu0
  %v1296 = vadd.f32 0.0, %v1295
  %1297 = vmatmul.f32.gmra.mxu0 %v493
  %v1298 = vpop.f32.mrf.mxu0
  %v1299 = vadd.f32 0.0, %v1298
  %1300 = vmatmul.f32.gmra.mxu0 %v495
  %v1301 = vpop.f32.mrf.mxu0
  %v1302 = vadd.f32 0.0, %v1301
  %1303 = vmatmul.f32.gmra.mxu0 %v497
  %v1304 = vpop.f32.mrf.mxu0
  %v1305 = vadd.f32 0.0, %v1304
  %1306 = vmatmul.f32.gmra.mxu0 %v499
  %v1307 = vpop.f32.mrf.mxu0
  %v1308 = vadd.f32 0.0, %v1307
  %1309 = vdwg.mxu0
  %1310 = vmatpush.msra.mxu0 %v722
  %1311 = vmatpush.msra.mxu0 %v715
  %1312 = vmatpush.msra.mxu0 %v708
  %1313 = vmatpush.msra.mxu0 %v701
  %1314 = vmatpush.msra.mxu0 %v694
  %1315 = vmatpush.msra.mxu0 %v687
  %1316 = vmatpush.msra.mxu0 %v680
  %1317 = vmatpush.msra.mxu0 %v673
  %1318 = vmatpush.msra.mxu0 %v666
  %1319 = vmatpush.msra.mxu0 %v659
  %1320 = vmatpush.msra.mxu0 %v652
  %1321 = vmatpush.msra.mxu0 %v645
  %1322 = vmatpush.msra.mxu0 %v638
  %1323 = vmatpush.msra.mxu0 %v631
  %1324 = vmatpush.msra.mxu0 %v624
  %1325 = vmatpush.msra.mxu0 %v617
  %1326 = vmatmul.f32.gmra.mxu0 %v470
  %v1327 = vpop.f32.mrf.mxu0
  %v1328 = vadd.f32 %v1263, %v1327
  %1329 = vmatmul.f32.gmra.mxu0 %v472
  %v1330 = vpop.f32.mrf.mxu0
  %v1331 = vadd.f32 %v1266, %v1330
  %1332 = vmatmul.f32.gmra.mxu0 %v474
  %v1333 = vpop.f32.mrf.mxu0
  %v1334 = vadd.f32 %v1269, %v1333
  %1335 = vmatmul.f32.gmra.mxu0 %v476
  %v1336 = vpop.f32.mrf.mxu0
  %v1337 = vadd.f32 %v1272, %v1336
  %1338 = vmatmul.f32.gmra.mxu0 %v478
  %v1339 = vpop.f32.mrf.mxu0
  %v1340 = vadd.f32 %v1275, %v1339
  %1341 = vmatmul.f32.gmra.mxu0 %v480
  %v1342 = vpop.f32.mrf.mxu0
  %v1343 = vadd.f32 %v1278, %v1342
  %1344 = vmatmul.f32.gmra.mxu0 %v482
  %v1345 = vpop.f32.mrf.mxu0
  %v1346 = vadd.f32 %v1281, %v1345
  %1347 = vmatmul.f32.gmra.mxu0 %v484
  %v1348 = vpop.f32.mrf.mxu0
  %v1349 = vadd.f32 %v1284, %v1348
  %1350 = vmatmul.f32.gmra.mxu0 %v486
  %v1351 = vpop.f32.mrf.mxu0
  %v1352 = vadd.f32 %v1287, %v1351
  %1353 = vmatmul.f32.gmra.mxu0 %v488
  %v1354 = vpop.f32.mrf.mxu0
  %v1355 = vadd.f32 %v1290, %v1354
  %1356 = vmatmul.f32.gmra.mxu0 %v490
  %v1357 = vpop.f32.mrf.mxu0
  %v1358 = vadd.f32 %v1293, %v1357
  %1359 = vmatmul.f32.gmra.mxu0 %v492
  %v1360 = vpop.f32.mrf.mxu0
  %v1361 = vadd.f32 %v1296, %v1360
  %1362 = vmatmul.f32.gmra.mxu0 %v494
  %v1363 = vpop.f32.mrf.mxu0
  %v1364 = vadd.f32 %v1299, %v1363
  %1365 = vmatmul.f32.gmra.mxu0 %v496
  %v1366 = vpop.f32.mrf.mxu0
  %v1367 = vadd.f32 %v1302, %v1366
  %1368 = vmatmul.f32.gmra.mxu0 %v498
  %v1369 = vpop.f32.mrf.mxu0
  %v1370 = vadd.f32 %v1305, %v1369
  %1371 = vmatmul.f32.gmra.mxu0 %v500
  %v1372 = vpop.f32.mrf.mxu0
  %v1373 = vadd.f32 %v1308, %v1372
  %1374 = vdwg.mxu0
  %1375 = vmatpush.msra.mxu0 %v611
  %1376 = vmatpush.msra.mxu0 %v604
  %1377 = vmatpush.msra.mxu0 %v597
  %1378 = vmatpush.msra.mxu0 %v590
  %1379 = vmatpush.msra.mxu0 %v583
  %1380 = vmatpush.msra.mxu0 %v576
  %1381 = vmatpush.msra.mxu0 %v569
  %1382 = vmatpush.msra.mxu0 %v562
  %1383 = vmatpush.msra.mxu0 %v555
  %1384 = vmatpush.msra.mxu0 %v548
  %1385 = vmatpush.msra.mxu0 %v541
  %1386 = vmatpush.msra.mxu0 %v534
  %1387 = vmatpush.msra.mxu0 %v527
  %1388 = vmatpush.msra.mxu0 %v520
  %1389 = vmatpush.msra.mxu0 %v513
  %1390 = vmatpush.msra.mxu0 %v506
  %1391 = vmatmul.f32.gmra.mxu0 %v469
  %v1392 = vpop.f32.mrf.mxu0
  %v1393 = vadd.f32 0.0, %v1392
  %1394 = vmatmul.f32.gmra.mxu0 %v471
  %v1395 = vpop.f32.mrf.mxu0
  %v1396 = vadd.f32 0.0, %v1395
  %1397 = vmatmul.f32.gmra.mxu0 %v473
  %v1398 = vpop.f32.mrf.mxu0
  %v1399 = vadd.f32 0.0, %v1398
  %1400 = vmatmul.f32.gmra.mxu0 %v475
  %v1401 = vpop.f32.mrf.mxu0
  %v1402 = vadd.f32 0.0, %v1401
  %1403 = vmatmul.f32.gmra.mxu0 %v477
  %v1404 = vpop.f32.mrf.mxu0
  %v1405 = vadd.f32 0.0, %v1404
  %1406 = vmatmul.f32.gmra.mxu0 %v479
  %v1407 = vpop.f32.mrf.mxu0
  %v1408 = vadd.f32 0.0, %v1407
  %1409 = vmatmul.f32.gmra.mxu0 %v481
  %v1410 = vpop.f32.mrf.mxu0
  %v1411 = vadd.f32 0.0, %v1410
  %1412 = vmatmul.f32.gmra.mxu0 %v483
  %v1413 = vpop.f32.mrf.mxu0
  %v1414 = vadd.f32 0.0, %v1413
  %1415 = vmatmul.f32.gmra.mxu0 %v485
  %v1416 = vpop.f32.mrf.mxu0
  %v1417 = vadd.f32 0.0, %v1416
  %1418 = vmatmul.f32.gmra.mxu0 %v487
  %v1419 = vpop.f32.mrf.mxu0
  %v1420 = vadd.f32 0.0, %v1419
  %1421 = vmatmul.f32.gmra.mxu0 %v489
  %v1422 = vpop.f32.mrf.mxu0
  %v1423 = vadd.f32 0.0, %v1422
  %1424 = vmatmul.f32.gmra.mxu0 %v491
  %v1425 = vpop.f32.mrf.mxu0
  %v1426 = vadd.f32 0.0, %v1425
  %1427 = vmatmul.f32.gmra.mxu0 %v493
  %v1428 = vpop.f32.mrf.mxu0
  %v1429 = vadd.f32 0.0, %v1428
  %1430 = vmatmul.f32.gmra.mxu0 %v495
  %v1431 = vpop.f32.mrf.mxu0
  %v1432 = vadd.f32 0.0, %v1431
  %1433 = vmatmul.f32.gmra.mxu0 %v497
  %v1434 = vpop.f32.mrf.mxu0
  %v1435 = vadd.f32 0.0, %v1434
  %1436 = vmatmul.f32.gmra.mxu0 %v499
  %v1437 = vpop.f32.mrf.mxu0
  %v1438 = vadd.f32 0.0, %v1437
  %1439 = vdwg.mxu0
  %1440 = vmatpush.msra.mxu0 %v723
  %1441 = vmatpush.msra.mxu0 %v716
  %1442 = vmatpush.msra.mxu0 %v709
  %1443 = vmatpush.msra.mxu0 %v702
  %1444 = vmatpush.msra.mxu0 %v695
  %1445 = vmatpush.msra.mxu0 %v688
  %1446 = vmatpush.msra.mxu0 %v681
  %1447 = vmatpush.msra.mxu0 %v674
  %1448 = vmatpush.msra.mxu0 %v667
  %1449 = vmatpush.msra.mxu0 %v660
  %1450 = vmatpush.msra.mxu0 %v653
  %1451 = vmatpush.msra.mxu0 %v646
  %1452 = vmatpush.msra.mxu0 %v639
  %1453 = vmatpush.msra.mxu0 %v632
  %1454 = vmatpush.msra.mxu0 %v625
  %1455 = vmatpush.msra.mxu0 %v618
  %1456 = vmatmul.f32.gmra.mxu0 %v470
  %v1457 = vpop.f32.mrf.mxu0
  %v1458 = vadd.f32 %v1393, %v1457
  %1459 = vmatmul.f32.gmra.mxu0 %v472
  %v1460 = vpop.f32.mrf.mxu0
  %v1461 = vadd.f32 %v1396, %v1460
  %1462 = vmatmul.f32.gmra.mxu0 %v474
  %v1463 = vpop.f32.mrf.mxu0
  %v1464 = vadd.f32 %v1399, %v1463
  %1465 = vmatmul.f32.gmra.mxu0 %v476
  %v1466 = vpop.f32.mrf.mxu0
  %v1467 = vadd.f32 %v1402, %v1466
  %1468 = vmatmul.f32.gmra.mxu0 %v478
  %v1469 = vpop.f32.mrf.mxu0
  %v1470 = vadd.f32 %v1405, %v1469
  %1471 = vmatmul.f32.gmra.mxu0 %v480
  %v1472 = vpop.f32.mrf.mxu0
  %v1473 = vadd.f32 %v1408, %v1472
  %1474 = vmatmul.f32.gmra.mxu0 %v482
  %v1475 = vpop.f32.mrf.mxu0
  %v1476 = vadd.f32 %v1411, %v1475
  %1477 = vmatmul.f32.gmra.mxu0 %v484
  %v1478 = vpop.f32.mrf.mxu0
  %v1479 = vadd.f32 %v1414, %v1478
  %1480 = vmatmul.f32.gmra.mxu0 %v486
  %v1481 = vpop.f32.mrf.mxu0
  %v1482 = vadd.f32 %v1417, %v1481
  %1483 = vmatmul.f32.gmra.mxu0 %v488
  %v1484 = vpop.f32.mrf.mxu0
  %v1485 = vadd.f32 %v1420, %v1484
  %1486 = vmatmul.f32.gmra.mxu0 %v490
  %v1487 = vpop.f32.mrf.mxu0
  %v1488 = vadd.f32 %v1423, %v1487
  %1489 = vmatmul.f32.gmra.mxu0 %v492
  %v1490 = vpop.f32.mrf.mxu0
  %v1491 = vadd.f32 %v1426, %v1490
  %1492 = vmatmul.f32.gmra.mxu0 %v494
  %v1493 = vpop.f32.mrf.mxu0
  %v1494 = vadd.f32 %v1429, %v1493
  %1495 = vmatmul.f32.gmra.mxu0 %v496
  %v1496 = vpop.f32.mrf.mxu0
  %v1497 = vadd.f32 %v1432, %v1496
  %1498 = vmatmul.f32.gmra.mxu0 %v498
  %v1499 = vpop.f32.mrf.mxu0
  %v1500 = vadd.f32 %v1435, %v1499
  %1501 = vmatmul.f32.gmra.mxu0 %v500
  %v1502 = vpop.f32.mrf.mxu0
  %v1503 = vadd.f32 %v1438, %v1502
  %1504 = vdwg.mxu0
  %1505 = vmatpush.msra.mxu0 %v612
  %1506 = vmatpush.msra.mxu0 %v605
  %1507 = vmatpush.msra.mxu0 %v598
  %1508 = vmatpush.msra.mxu0 %v591
  %1509 = vmatpush.msra.mxu0 %v584
  %1510 = vmatpush.msra.mxu0 %v577
  %1511 = vmatpush.msra.mxu0 %v570
  %1512 = vmatpush.msra.mxu0 %v563
  %1513 = vmatpush.msra.mxu0 %v556
  %1514 = vmatpush.msra.mxu0 %v549
  %1515 = vmatpush.msra.mxu0 %v542
  %1516 = vmatpush.msra.mxu0 %v535
  %1517 = vmatpush.msra.mxu0 %v528
  %1518 = vmatpush.msra.mxu0 %v521
  %1519 = vmatpush.msra.mxu0 %v514
  %1520 = vmatpush.msra.mxu0 %v507
  %1521 = vmatmul.f32.gmra.mxu0 %v469
  %v1522 = vpop.f32.mrf.mxu0
  %v1523 = vadd.f32 0.0, %v1522
  %1524 = vmatmul.f32.gmra.mxu0 %v471
  %v1525 = vpop.f32.mrf.mxu0
  %v1526 = vadd.f32 0.0, %v1525
  %1527 = vmatmul.f32.gmra.mxu0 %v473
  %v1528 = vpop.f32.mrf.mxu0
  %v1529 = vadd.f32 0.0, %v1528
  %1530 = vmatmul.f32.gmra.mxu0 %v475
  %v1531 = vpop.f32.mrf.mxu0
  %v1532 = vadd.f32 0.0, %v1531
  %1533 = vmatmul.f32.gmra.mxu0 %v477
  %v1534 = vpop.f32.mrf.mxu0
  %v1535 = vadd.f32 0.0, %v1534
  %1536 = vmatmul.f32.gmra.mxu0 %v479
  %v1537 = vpop.f32.mrf.mxu0
  %v1538 = vadd.f32 0.0, %v1537
  %1539 = vmatmul.f32.gmra.mxu0 %v481
  %v1540 = vpop.f32.mrf.mxu0
  %v1541 = vadd.f32 0.0, %v1540
  %1542 = vmatmul.f32.gmra.mxu0 %v483
  %v1543 = vpop.f32.mrf.mxu0
  %v1544 = vadd.f32 0.0, %v1543
  %1545 = vmatmul.f32.gmra.mxu0 %v485
  %v1546 = vpop.f32.mrf.mxu0
  %v1547 = vadd.f32 0.0, %v1546
  %1548 = vmatmul.f32.gmra.mxu0 %v487
  %v1549 = vpop.f32.mrf.mxu0
  %v1550 = vadd.f32 0.0, %v1549
  %1551 = vmatmul.f32.gmra.mxu0 %v489
  %v1552 = vpop.f32.mrf.mxu0
  %v1553 = vadd.f32 0.0, %v1552
  %1554 = vmatmul.f32.gmra.mxu0 %v491
  %v1555 = vpop.f32.mrf.mxu0
  %v1556 = vadd.f32 0.0, %v1555
  %1557 = vmatmul.f32.gmra.mxu0 %v493
  %v1558 = vpop.f32.mrf.mxu0
  %v1559 = vadd.f32 0.0, %v1558
  %1560 = vmatmul.f32.gmra.mxu0 %v495
  %v1561 = vpop.f32.mrf.mxu0
  %v1562 = vadd.f32 0.0, %v1561
  %1563 = vmatmul.f32.gmra.mxu0 %v497
  %v1564 = vpop.f32.mrf.mxu0
  %v1565 = vadd.f32 0.0, %v1564
  %1566 = vmatmul.f32.gmra.mxu0 %v499
  %v1567 = vpop.f32.mrf.mxu0
  %v1568 = vadd.f32 0.0, %v1567
  %1569 = vdwg.mxu0
  %1570 = vmatpush.msra.mxu0 %v724
  %1571 = vmatpush.msra.mxu0 %v717
  %1572 = vmatpush.msra.mxu0 %v710
  %1573 = vmatpush.msra.mxu0 %v703
  %1574 = vmatpush.msra.mxu0 %v696
  %1575 = vmatpush.msra.mxu0 %v689
  %1576 = vmatpush.msra.mxu0 %v682
  %1577 = vmatpush.msra.mxu0 %v675
  %1578 = vmatpush.msra.mxu0 %v668
  %1579 = vmatpush.msra.mxu0 %v661
  %1580 = vmatpush.msra.mxu0 %v654
  %1581 = vmatpush.msra.mxu0 %v647
  %1582 = vmatpush.msra.mxu0 %v640
  %1583 = vmatpush.msra.mxu0 %v633
  %1584 = vmatpush.msra.mxu0 %v626
  %1585 = vmatpush.msra.mxu0 %v619
  %1586 = vmatmul.f32.gmra.mxu0 %v470
  %v1587 = vpop.f32.mrf.mxu0
  %v1588 = vadd.f32 %v1523, %v1587
  %1589 = vmatmul.f32.gmra.mxu0 %v472
  %v1590 = vpop.f32.mrf.mxu0
  %v1591 = vadd.f32 %v1526, %v1590
  %1592 = vmatmul.f32.gmra.mxu0 %v474
  %v1593 = vpop.f32.mrf.mxu0
  %v1594 = vadd.f32 %v1529, %v1593
  %1595 = vmatmul.f32.gmra.mxu0 %v476
  %v1596 = vpop.f32.mrf.mxu0
  %v1597 = vadd.f32 %v1532, %v1596
  %1598 = vmatmul.f32.gmra.mxu0 %v478
  %v1599 = vpop.f32.mrf.mxu0
  %v1600 = vadd.f32 %v1535, %v1599
  %1601 = vmatmul.f32.gmra.mxu0 %v480
  %v1602 = vpop.f32.mrf.mxu0
  %v1603 = vadd.f32 %v1538, %v1602
  %1604 = vmatmul.f32.gmra.mxu0 %v482
  %v1605 = vpop.f32.mrf.mxu0
  %v1606 = vadd.f32 %v1541, %v1605
  %1607 = vmatmul.f32.gmra.mxu0 %v484
  %v1608 = vpop.f32.mrf.mxu0
  %v1609 = vadd.f32 %v1544, %v1608
  %1610 = vmatmul.f32.gmra.mxu0 %v486
  %v1611 = vpop.f32.mrf.mxu0
  %v1612 = vadd.f32 %v1547, %v1611
  %1613 = vmatmul.f32.gmra.mxu0 %v488
  %v1614 = vpop.f32.mrf.mxu0
  %v1615 = vadd.f32 %v1550, %v1614
  %1616 = vmatmul.f32.gmra.mxu0 %v490
  %v1617 = vpop.f32.mrf.mxu0
  %v1618 = vadd.f32 %v1553, %v1617
  %1619 = vmatmul.f32.gmra.mxu0 %v492
  %v1620 = vpop.f32.mrf.mxu0
  %v1621 = vadd.f32 %v1556, %v1620
  %1622 = vmatmul.f32.gmra.mxu0 %v494
  %v1623 = vpop.f32.mrf.mxu0
  %v1624 = vadd.f32 %v1559, %v1623
  %1625 = vmatmul.f32.gmra.mxu0 %v496
  %v1626 = vpop.f32.mrf.mxu0
  %v1627 = vadd.f32 %v1562, %v1626
  %1628 = vmatmul.f32.gmra.mxu0 %v498
  %v1629 = vpop.f32.mrf.mxu0
  %v1630 = vadd.f32 %v1565, %v1629
  %1631 = vmatmul.f32.gmra.mxu0 %v500
  %v1632 = vpop.f32.mrf.mxu0
  %v1633 = vadd.f32 %v1568, %v1632
  %1634 = vdwg.mxu0
  %1635 = vst [vmem:[%s5] sm:$0xff] %v808
  %1636 = vst [vmem:[%s5 + $0x8] sm:$0xff] %v938
  %1637 = vst [vmem:[%s5 + $0x10] sm:$0xff] %v1068
  %1638 = vst [vmem:[%s5 + $0x18] sm:$0xff] %v1198
  %1639 = vst [vmem:[%s5 + $0x20] sm:$0xff] %v1328
  %1640 = vst [vmem:[%s5 + $0x28] sm:$0xff] %v1458
  %1641 = vst.msk [vmem:[%s5 + $0x30] sm:$0xff] %vm82, %v1588
  %1642 = vst [vmem:[%s5 + $0x38] sm:$0xff] %v811
  %1643 = vst [vmem:[%s5 + $0x40] sm:$0xff] %v941
  %1644 = vst [vmem:[%s5 + $0x48] sm:$0xff] %v1071
  %1645 = vst [vmem:[%s5 + $0x50] sm:$0xff] %v1201
  %1646 = vst [vmem:[%s5 + $0x58] sm:$0xff] %v1331
  %1647 = vst [vmem:[%s5 + $0x60] sm:$0xff] %v1461
  %1648 = vst.msk [vmem:[%s5 + $0x68] sm:$0xff] %vm82, %v1591
  %1649 = vst [vmem:[%s5 + $0x70] sm:$0xff] %v814
  %1650 = vst [vmem:[%s5 + $0x78] sm:$0xff] %v944
  %1651 = vst [vmem:[%s5 + $0x80] sm:$0xff] %v1074
  %1652 = vst [vmem:[%s5 + $0x88] sm:$0xff] %v1204
  %1653 = vst [vmem:[%s5 + $0x90] sm:$0xff] %v1334
  %1654 = vst [vmem:[%s5 + $0x98] sm:$0xff] %v1464
  %1655 = vst.msk [vmem:[%s5 + $0xa0] sm:$0xff] %vm82, %v1594
  %1656 = vst [vmem:[%s5 + $0xa8] sm:$0xff] %v817
  %1657 = vst [vmem:[%s5 + $0xb0] sm:$0xff] %v947
  %1658 = vst [vmem:[%s5 + $0xb8] sm:$0xff] %v1077
  %1659 = vst [vmem:[%s5 + $0xc0] sm:$0xff] %v1207
  %1660 = vst [vmem:[%s5 + $0xc8] sm:$0xff] %v1337
  %1661 = vst [vmem:[%s5 + $0xd0] sm:$0xff] %v1467
  %1662 = vst.msk [vmem:[%s5 + $0xd8] sm:$0xff] %vm82, %v1597
  %1663 = vst [vmem:[%s5 + $0xe0] sm:$0xff] %v820
  %1664 = vst [vmem:[%s5 + $0xe8] sm:$0xff] %v950
  %1665 = vst [vmem:[%s5 + $0xf0] sm:$0xff] %v1080
  %1666 = vst [vmem:[%s5 + $0xf8] sm:$0xff] %v1210
  %1667 = vst [vmem:[%s5 + $0x100] sm:$0xff] %v1340
  %1668 = vst [vmem:[%s5 + $0x108] sm:$0xff] %v1470
  %1669 = vst.msk [vmem:[%s5 + $0x110] sm:$0xff] %vm82, %v1600
  %1670 = vst [vmem:[%s5 + $0x118] sm:$0xff] %v823
  %1671 = vst [vmem:[%s5 + $0x120] sm:$0xff] %v953
  %1672 = vst [vmem:[%s5 + $0x128] sm:$0xff] %v1083
  %1673 = vst [vmem:[%s5 + $0x130] sm:$0xff] %v1213
  %1674 = vst [vmem:[%s5 + $0x138] sm:$0xff] %v1343
  %1675 = vst [vmem:[%s5 + $0x140] sm:$0xff] %v1473
  %1676 = vst.msk [vmem:[%s5 + $0x148] sm:$0xff] %vm82, %v1603
  %1677 = vst [vmem:[%s5 + $0x150] sm:$0xff] %v826
  %1678 = vst [vmem:[%s5 + $0x158] sm:$0xff] %v956
  %1679 = vst [vmem:[%s5 + $0x160] sm:$0xff] %v1086
  %1680 = vst [vmem:[%s5 + $0x168] sm:$0xff] %v1216
  %1681 = vst [vmem:[%s5 + $0x170] sm:$0xff] %v1346
  %1682 = vst [vmem:[%s5 + $0x178] sm:$0xff] %v1476
  %1683 = vst.msk [vmem:[%s5 + $0x180] sm:$0xff] %vm82, %v1606
  %1684 = vst [vmem:[%s5 + $0x188] sm:$0xff] %v829
  %1685 = vst [vmem:[%s5 + $0x190] sm:$0xff] %v959
  %1686 = vst [vmem:[%s5 + $0x198] sm:$0xff] %v1089
  %1687 = vst [vmem:[%s5 + $0x1a0] sm:$0xff] %v1219
  %1688 = vst [vmem:[%s5 + $0x1a8] sm:$0xff] %v1349
  %1689 = vst [vmem:[%s5 + $0x1b0] sm:$0xff] %v1479
  %1690 = vst.msk [vmem:[%s5 + $0x1b8] sm:$0xff] %vm82, %v1609
  %1691 = vst [vmem:[%s5 + $0x1c0] sm:$0xff] %v832
  %1692 = vst [vmem:[%s5 + $0x1c8] sm:$0xff] %v962
  %1693 = vst [vmem:[%s5 + $0x1d0] sm:$0xff] %v1092
  %1694 = vst [vmem:[%s5 + $0x1d8] sm:$0xff] %v1222
  %1695 = vst [vmem:[%s5 + $0x1e0] sm:$0xff] %v1352
  %1696 = vst [vmem:[%s5 + $0x1e8] sm:$0xff] %v1482
  %1697 = vst.msk [vmem:[%s5 + $0x1f0] sm:$0xff] %vm82, %v1612
  %1698 = vst [vmem:[%s5 + $0x1f8] sm:$0xff] %v835
  %1699 = vst [vmem:[%s5 + $0x200] sm:$0xff] %v965
  %1700 = vst [vmem:[%s5 + $0x208] sm:$0xff] %v1095
  %1701 = vst [vmem:[%s5 + $0x210] sm:$0xff] %v1225
  %1702 = vst [vmem:[%s5 + $0x218] sm:$0xff] %v1355
  %1703 = vst [vmem:[%s5 + $0x220] sm:$0xff] %v1485
  %1704 = vst.msk [vmem:[%s5 + $0x228] sm:$0xff] %vm82, %v1615
  %1705 = vst [vmem:[%s5 + $0x230] sm:$0xff] %v838
  %1706 = vst [vmem:[%s5 + $0x238] sm:$0xff] %v968
  %1707 = vst [vmem:[%s5 + $0x240] sm:$0xff] %v1098
  %1708 = vst [vmem:[%s5 + $0x248] sm:$0xff] %v1228
  %1709 = vst [vmem:[%s5 + $0x250] sm:$0xff] %v1358
  %1710 = vst [vmem:[%s5 + $0x258] sm:$0xff] %v1488
  %1711 = vst.msk [vmem:[%s5 + $0x260] sm:$0xff] %vm82, %v1618
  %1712 = vst [vmem:[%s5 + $0x268] sm:$0xff] %v841
  %1713 = vst [vmem:[%s5 + $0x270] sm:$0xff] %v971
  %1714 = vst [vmem:[%s5 + $0x278] sm:$0xff] %v1101
  %1715 = vst [vmem:[%s5 + $0x280] sm:$0xff] %v1231
  %1716 = vst [vmem:[%s5 + $0x288] sm:$0xff] %v1361
  %1717 = vst [vmem:[%s5 + $0x290] sm:$0xff] %v1491
  %1718 = vst.msk [vmem:[%s5 + $0x298] sm:$0xff] %vm82, %v1621
  %1719 = vst [vmem:[%s5 + $0x2a0] sm:$0xff] %v844
  %1720 = vst [vmem:[%s5 + $0x2a8] sm:$0xff] %v974
  %1721 = vst [vmem:[%s5 + $0x2b0] sm:$0xff] %v1104
  %1722 = vst [vmem:[%s5 + $0x2b8] sm:$0xff] %v1234
  %1723 = vst [vmem:[%s5 + $0x2c0] sm:$0xff] %v1364
  %1724 = vst [vmem:[%s5 + $0x2c8] sm:$0xff] %v1494
  %1725 = vst.msk [vmem:[%s5 + $0x2d0] sm:$0xff] %vm82, %v1624
  %1726 = vst [vmem:[%s5 + $0x2d8] sm:$0xff] %v847
  %1727 = vst [vmem:[%s5 + $0x2e0] sm:$0xff] %v977
  %1728 = vst [vmem:[%s5 + $0x2e8] sm:$0xff] %v1107
  %1729 = vst [vmem:[%s5 + $0x2f0] sm:$0xff] %v1237
  %1730 = vst [vmem:[%s5 + $0x2f8] sm:$0xff] %v1367
  %1731 = vst [vmem:[%s5 + $0x300] sm:$0xff] %v1497
  %1732 = vst.msk [vmem:[%s5 + $0x308] sm:$0xff] %vm82, %v1627
  %1733 = vst [vmem:[%s5 + $0x310] sm:$0xff] %v850
  %1734 = vst [vmem:[%s5 + $0x318] sm:$0xff] %v980
  %1735 = vst [vmem:[%s5 + $0x320] sm:$0xff] %v1110
  %1736 = vst [vmem:[%s5 + $0x328] sm:$0xff] %v1240
  %1737 = vst [vmem:[%s5 + $0x330] sm:$0xff] %v1370
  %1738 = vst [vmem:[%s5 + $0x338] sm:$0xff] %v1500
  %1739 = vst.msk [vmem:[%s5 + $0x340] sm:$0xff] %vm82, %v1630
  %1740 = vst [vmem:[%s5 + $0x348] sm:$0xff] %v853
  %1741 = vst [vmem:[%s5 + $0x350] sm:$0xff] %v983
  %1742 = vst [vmem:[%s5 + $0x358] sm:$0xff] %v1113
  %1743 = vst [vmem:[%s5 + $0x360] sm:$0xff] %v1243
  %1744 = vst [vmem:[%s5 + $0x368] sm:$0xff] %v1373
  %1745 = vst [vmem:[%s5 + $0x370] sm:$0xff] %v1503
  %1746 = vst.msk [vmem:[%s5 + $0x378] sm:$0xff] %vm82, %v1633
  // Predicated region
  $region22: #{module_m_forward.1} parent=0 // pred_check
    _
  $region23: #{module_m_forward.1} parent=0 // pred_check_branch
    %1748 = sbr.rel (0) target = $region25
  $region24: #{module_m_forward.1} parent=0 // pred_region
    _
  $region25: #{module_m_forward.1} parent=0 // pred_fallthru
    _
  // Predicated region
  $region26: #{module_m_forward.1} parent=0 // pred_check
    _
  $region27: #{module_m_forward.1} parent=0 // pred_check_branch
    %1750 = sbr.rel (0) target = $region29
  $region28: #{module_m_forward.1} parent=0 // pred_region
    _
  $region29: #{module_m_forward.1} parent=0 // pred_fallthru
    _

</llo_original>
